<compile_context>
chip_gen: v7x
topology: tpu7x:2x2x1
jax: 0.10.0
libtpu: 0.0.40
codegen_flags: <defaults>
</compile_context>

<pallas_src>
import functools

import jax
import jax.numpy as jnp
from jax.experimental import pallas as pl
from jax.experimental.pallas import tpu as pltpu

BN_EPS = 1e-5
BN_SCALE = 1.0 / (1.0 + BN_EPS) ** 0.5  # eval-mode BatchNorm, default stats


def _pick_hw_tile(hw, cap=1024):
    """Largest tile <= cap that divides hw (prefer multiples of 256, then 8)."""
    if hw <= cap:
        return hw
    for align in (256, 8):
        t = cap - cap % align
        while t >= align:
            if hw % t == 0:
                return t
            t -= align
    return hw


def _pick_b_tile(b, cap=8):
    if b <= cap:
        return b
    for t in range(cap, 0, -1):
        if b % t == 0:
            return t
    return 1


# ----------------------------------------------------------------------------
# Kernel A: fused (stand-in backbone) + delft_block
#   x   = relu(patches @ pe_w)              (backbone stand-in, fused)
#   o1  = relu(bn1(conv1(x)))               (BN scale pre-folded into w1/b1)
#   out = conv2(o1) + downsample(x) + bias  (both N=1 projections on the VPU)
#   prob = softplus(out) ; y = relu(x * prob)
# ----------------------------------------------------------------------------
def _delft_kernel(p_ref, pe_ref, w1_ref, b1_ref, w2_ref, wd_ref, bias_ref,
                  y_ref, prob_ref):
    # TODO(synk): resnet_50 backbone (feature1) is external/undefined in the
    # source; replaced by a 4x4/stride-4 patch-embed matmul + relu, fused here
    # so the (tile_hw, 256) activation never round-trips through HBM.
    x = jnp.dot(p_ref[0], pe_ref[...], preferred_element_type=jnp.float32)
    x = jnp.maximum(x, 0.0)                          # (tile_hw, 256) f32
    x_bf = x.astype(jnp.bfloat16)                    # MXU operand

    # conv1 (bf16 MXU, f32 acc) + folded bn1 + relu
    o1 = jnp.dot(x_bf, w1_ref[...], preferred_element_type=jnp.float32)
    o1 = jnp.maximum(o1 + b1_ref[...], 0.0)          # (tile_hw, 256) f32

    # conv2 (256->1) and downsample (256->1) as VPU multiply + lane reduce
    # (avoids two N=1 MXU passes and their masked narrow stores).
    o2 = jnp.sum(o1 * w2_ref[...], axis=-1, keepdims=True)    # (tile_hw, 1)
    res = jnp.sum(x * wd_ref[...], axis=-1, keepdims=True)    # (tile_hw, 1)
    # NOTE: self.bn(residual) is discarded in the PyTorch source (typo) -> skip
    out = o2 + res + bias_ref[0, 0]                  # folded (b2 + bd) scalar

    # softplus (numerically stable), f32
    prob = jnp.maximum(out, 0.0) + jnp.log1p(jnp.exp(-jnp.abs(out)))
    y = jnp.maximum(x * prob, 0.0)                   # ReLU from Attn_Graph.forward

    y_ref[0] = y.astype(y_ref.dtype)                 # bf16 (feeds GCN matmuls)
    prob_ref[0] = prob                               # f32 (feeds softmax/top-k)


def delft_call(patches, p, c_out=256):
    b, hw, cp = patches.shape
    tile_hw = _pick_hw_tile(hw)
    grid = (b, hw // tile_hw)
    return pl.pallas_call(
        _delft_kernel,
        out_shape=(jax.ShapeDtypeStruct((b, hw, c_out), jnp.bfloat16),
                   jax.ShapeDtypeStruct((b, hw, 1), jnp.float32)),
        grid=grid,
        in_specs=[
            pl.BlockSpec((1, tile_hw, cp), lambda i, j: (i, j, 0)),   # patches (bf16)
            pl.BlockSpec((cp, c_out), lambda i, j: (0, 0)),           # pe_w (bf16)
            pl.BlockSpec((c_out, 256), lambda i, j: (0, 0)),          # w1 (bf16)
            pl.BlockSpec((1, 256), lambda i, j: (0, 0)),              # b1 (f32)
            pl.BlockSpec((1, 256), lambda i, j: (0, 0)),              # w2 row (f32)
            pl.BlockSpec((1, c_out), lambda i, j: (0, 0)),            # wd row (f32)
            pl.BlockSpec(memory_space=pltpu.MemorySpace.SMEM),        # bias (1,1)
        ],
        out_specs=(pl.BlockSpec((1, tile_hw, c_out), lambda i, j: (i, j, 0)),
                   pl.BlockSpec((1, tile_hw, 1), lambda i, j: (i, j, 0))),
        compiler_params=pltpu.CompilerParams(
            dimension_semantics=("parallel", "parallel")),
    )(patches, p["pe_w"], p["d_w1"], p["d_b1"], p["d_w2"], p["d_wd"], p["d_bias"])


# ----------------------------------------------------------------------------
# Kernel B: fused graph head, whole batch-tile per grid step
#   A_norm = D^-1/2 A D^-1/2 ; 4x ((A_norm @ H) @ W) GCN chain (+ folded bn2,
#   relu), mean over nodes, 2-layer MLP (no nonlinearity between, as in source).
# ----------------------------------------------------------------------------
def _gcn_kernel(feat_ref, a_ref, g1_ref, g2_ref, g3_ref, g4_ref,
                mw1_ref, mb1_ref, mw2_ref, mb2_ref, out_ref):
    B, K, _ = feat_ref.shape

    A = a_ref[...]                                  # (B, k, k) f32
    d = jnp.sum(A, axis=2, keepdims=True)           # row sums  (sum(A, 2))
    dinv = jax.lax.rsqrt(d)                         # pow(., -0.5)
    An = (dinv * A * jnp.swapaxes(dinv, 1, 2)).astype(jnp.bfloat16)

    def gcn(h_bf, w_ref):
        # Matches Graph_Conv: (A @ H) @ W, batched over B then flattened so
        # the weight matmul sees M = B*k rows on the MXU.
        ah = jnp.einsum('bij,bjc->bic', An, h_bf,
                        preferred_element_type=jnp.float32)
        ah = ah.astype(jnp.bfloat16).reshape(B * K, -1)
        hw_ = jnp.dot(ah, w_ref[...], preferred_element_type=jnp.float32)
        return hw_.reshape(B, K, -1)

    h = feat_ref[...]                                             # bf16
    h = jnp.maximum(gcn(h, g1_ref), 0.0)                          # bn2 folded
    h = jnp.maximum(gcn(h.astype(jnp.bfloat16), g2_ref), 0.0)
    h = jnp.maximum(gcn(h.astype(jnp.bfloat16), g3_ref), 0.0)
    h = gcn(h.astype(jnp.bfloat16), g4_ref)                       # (B,k,64) f32

    y6 = jnp.mean(h, axis=1)                                      # (B, 64)
    y6 = jnp.dot(y6.astype(jnp.bfloat16), mw1_ref[...],
                 preferred_element_type=jnp.float32) + mb1_ref[...]
    y6 = jnp.dot(y6.astype(jnp.bfloat16), mw2_ref[...],
                 preferred_element_type=jnp.float32) + mb2_ref[...]
    out_ref[...] = y6


def gcn_call(feat, A, p, num_class):
    b, k, c = feat.shape
    bt = _pick_b_tile(b)
    return pl.pallas_call(
        _gcn_kernel,
        out_shape=jax.ShapeDtypeStruct((b, num_class), jnp.float32),
        grid=(b // bt,),
        in_specs=[
            pl.BlockSpec((bt, k, c), lambda i: (i, 0, 0)),
            pl.BlockSpec((bt, k, k), lambda i: (i, 0, 0)),
            pl.BlockSpec((256, 256), lambda i: (0, 0)),
            pl.BlockSpec((256, 128), lambda i: (0, 0)),
            pl.BlockSpec((128, 128), lambda i: (0, 0)),
            pl.BlockSpec((128, 64), lambda i: (0, 0)),
            pl.BlockSpec((64, 32), lambda i: (0, 0)),
            pl.BlockSpec((1, 32), lambda i: (0, 0)),
            pl.BlockSpec((32, num_class), lambda i: (0, 0)),
            pl.BlockSpec((1, num_class), lambda i: (0, 0)),
        ],
        out_specs=pl.BlockSpec((bt, num_class), lambda i: (i, 0)),
        compiler_params=pltpu.CompilerParams(dimension_semantics=("parallel",)),
    )(feat, A, p["g1"], p["g2"], p["g3"], p["g4"],
      p["mw1"], p["mb1"], p["mw2"], p["mb2"])


# ----------------------------------------------------------------------------
# Full forward (glue in plain JAX)
# ----------------------------------------------------------------------------
def attn_graph_forward(x, params, *, k, num_class):
    b, c_in, H, W = x.shape
    h, w = H // 4, W // 4
    hw = h * w
    # Patch extraction for the stand-in backbone (layout plumbing only; the
    # matmul + relu and the whole delft block run inside Kernel A).
    x_nhwc = jnp.transpose(x, (0, 2, 3, 1))
    patches = (x_nhwc.reshape(b, h, 4, w, 4, c_in)
               .transpose(0, 1, 3, 2, 4, 5)
               .reshape(b, hw, 16 * c_in)).astype(jnp.bfloat16)

    # fused backbone stand-in + delft attention block (Pallas kernel A)
    y5, prob = delft_call(patches, params)      # (b,hw,256) bf16, (b,hw,1) f32

    # softmax + topk (glue)
    att = jax.nn.softmax(prob.reshape(b, hw), axis=1)
    _, ind = jax.lax.top_k(att, k)                            # (b, k) int32
    # NOTE: source hard-codes `// 56` (224x224 input); use the actual width.
    ind_x = ind // w
    ind_y = ind % w
    ind_new = jnp.stack((ind_x, ind_y), axis=2)               # (b, k, 2)

    # TODO(synk): get_dist_mat is external/undefined; using exp(-euclidean)
    # adjacency built from the top-k coordinates.
    coords = ind_new.astype(jnp.float32)
    diff = coords[:, :, None, :] - coords[:, None, :, :]
    dist = jnp.sqrt(jnp.sum(diff * diff, axis=-1))
    A = jnp.exp(-dist)                                        # (b, k, k)

    # gather node features (glue); y5 is channels-last (b, hw, c) bf16
    feat = jnp.take_along_axis(y5, ind[:, :, None], axis=1)   # (b, k, 256)

    # GCN chain + mean + MLP (Pallas kernel B)
    y6 = gcn_call(feat, A, params, num_class)                 # (b, num_class)
    return y6, ind


# ----------------------------------------------------------------------------
# Parameter init (PyTorch-style layouts) + one-time kernel-layout preparation
# ----------------------------------------------------------------------------
def init_params(key, num_class=10, c_in=3):
    ks = jax.random.split(key, 10)

    def xavier(kk, shape):  # Graph_Conv weights
        std = (2.0 / (shape[0] + shape[1])) ** 0.5
        return (std * jax.random.normal(kk, shape)).astype(jnp.float32)

    def kaiming(kk, shape):  # conv / linear weights (out, in)
        std = (2.0 / shape[1]) ** 0.5
        return (std * jax.random.normal(kk, shape)).astype(jnp.float32)

    return dict(
        pe_w=kaiming(ks[0], (16 * c_in, 256)),     # stand-in backbone
        d_w1=kaiming(ks[1], (256, 256)),           # delft conv1 (out, in)
        d_b1=jnp.zeros((1, 256), jnp.float32),
        d_w2=kaiming(ks[2], (1, 256)),             # delft conv2 (1x1)
        d_b2=jnp.zeros((1, 1), jnp.float32),
        d_wd=kaiming(ks[3], (1, 256)),             # delft downsample (1x1)
        d_bd=jnp.zeros((1, 1), jnp.float32),
        g1=xavier(ks[4], (256, 256)),
        g2=xavier(ks[5], (256, 128)),
        g3=xavier(ks[6], (128, 128)),
        g4=xavier(ks[7], (128, 64)),
        mw1=kaiming(ks[8], (32, 64)),              # Linear(64, 32) (out, in)
        mb1=jnp.zeros((1, 32), jnp.float32),
        mw2=kaiming(ks[9], (num_class, 32)),       # Linear(32, nc) (out, in)
        mb2=jnp.zeros((1, num_class), jnp.float32),
    )


def prepare_params(p):
    """One-time layout plumbing: pre-transpose to (in, out), fold eval-mode BN
    scales into adjacent weights, cast MXU operands to bf16, fold the two
    scalar 1x1-conv biases into one SMEM scalar."""
    return dict(
        pe_w=p["pe_w"].astype(jnp.bfloat16),                        # (48, 256)
        # delft: conv1 + bn1 folded, (in, out) layout, bf16 MXU operand
        d_w1=(p["d_w1"].T * BN_SCALE).astype(jnp.bfloat16),         # (256, 256)
        d_b1=(p["d_b1"] * BN_SCALE).astype(jnp.float32),            # (1, 256)
        d_w2=p["d_w2"].astype(jnp.float32),                         # (1, 256) VPU row
        d_wd=p["d_wd"].astype(jnp.float32),                         # (1, 256) VPU row
        d_bias=(p["d_b2"] + p["d_bd"]).reshape(1, 1).astype(jnp.float32),
        # GCN: bn2 scale folded into g1; bf16 MXU operands
        g1=(p["g1"] * BN_SCALE).astype(jnp.bfloat16),
        g2=p["g2"].astype(jnp.bfloat16),
        g3=p["g3"].astype(jnp.bfloat16),
        g4=p["g4"].astype(jnp.bfloat16),
        # MLP: (in, out) layout, bf16 weights / f32 biases
        mw1=p["mw1"].T.astype(jnp.bfloat16),                        # (64, 32)
        mb1=p["mb1"].astype(jnp.float32),
        mw2=p["mw2"].T.astype(jnp.bfloat16),                        # (32, nc)
        mb2=p["mb2"].astype(jnp.float32),
    )


if __name__ == "__main__":
    key = jax.random.PRNGKey(0)
    kx, kp = jax.random.split(key)

    NUM_CLASS = 10
    K = 16                                   # small k (<= h*w) for tiny shapes
    x = jax.random.normal(kx, (2, 3, 32, 32), jnp.float32)   # NCHW like PyTorch
    params = prepare_params(init_params(kp, num_class=NUM_CLASS, c_in=3))

    fwd = jax.jit(functools.partial(attn_graph_forward, k=K, num_class=NUM_CLASS))
    y6, ind = fwd(x, params)
    jax.block_until_ready((y6, ind))
    assert y6.shape == (2, NUM_CLASS) and ind.shape == (2, K)
    assert bool(jnp.all(jnp.isfinite(y6)))
    print("KERNEL_OK")
</pallas_src>

<mosaic_0001>
module attributes {stable_mosaic.version = 11 : i64} {
  func.func @_delft_kernel(%arg0: i32, %arg1: i32, %arg2: memref<1x64x48xbf16, #tpu.memory_space<vmem>>, %arg3: memref<48x256xbf16, #tpu.memory_space<vmem>>, %arg4: memref<256x256xbf16, #tpu.memory_space<vmem>>, %arg5: memref<1x256xf32, #tpu.memory_space<vmem>>, %arg6: memref<1x256xf32, #tpu.memory_space<vmem>>, %arg7: memref<1x256xf32, #tpu.memory_space<vmem>>, %arg8: memref<1x1xf32, #tpu.memory_space<smem>>, %arg9: memref<1x64x256xbf16, #tpu.memory_space<vmem>>, %arg10: memref<1x64x1xf32, #tpu.memory_space<vmem>>) attributes {dimension_semantics = [#tpu.dimension_semantics<parallel>, #tpu.dimension_semantics<parallel>], iteration_bounds = array<i64: 2, 1>, scalar_prefetch = 0 : i64, scratch_operands = 0 : i64, tpu.core_type = #tpu.core_type<tc>, window_params = [{transform_indices = @transform_0, window_bounds = array<i64: 1, 64, 48>}, {pipeline_mode = #tpu.pipeline_mode<synchronous>, transform_indices = @transform_1, window_bounds = array<i64: 48, 256>}, {pipeline_mode = #tpu.pipeline_mode<synchronous>, transform_indices = @transform_2, window_bounds = array<i64: 256, 256>}, {pipeline_mode = #tpu.pipeline_mode<synchronous>, transform_indices = @transform_3, window_bounds = array<i64: 1, 256>}, {pipeline_mode = #tpu.pipeline_mode<synchronous>, transform_indices = @transform_4, window_bounds = array<i64: 1, 256>}, {pipeline_mode = #tpu.pipeline_mode<synchronous>, transform_indices = @transform_5, window_bounds = array<i64: 1, 256>}, {transform_indices = @transform_6, window_bounds = array<i64: 1, 1>}, {transform_indices = @transform_7, window_bounds = array<i64: 1, 64, 256>}, {transform_indices = @transform_8, window_bounds = array<i64: 1, 64, 1>}]} {
    %c0 = arith.constant 0 : index
    %c0_0 = arith.constant 0 : index
    %c0_1 = arith.constant 0 : index
    %0 = vector.load %arg2[%c0, %c0_0, %c0_1] : memref<1x64x48xbf16, #tpu.memory_space<vmem>>, vector<1x64x48xbf16>
    %1 = vector.shape_cast %0 : vector<1x64x48xbf16> to vector<64x48xbf16>
    %c0_2 = arith.constant 0 : index
    %c0_3 = arith.constant 0 : index
    %2 = vector.load %arg3[%c0_2, %c0_3] : memref<48x256xbf16, #tpu.memory_space<vmem>>, vector<48x256xbf16>
    %cst = arith.constant dense<0.000000e+00> : vector<64x256xf32>
    %3 = tpu.matmul %1, %2, %cst {dimension_numbers = #tpu.dot_dimension_numbers<[1], [0], [0], [1], [0, 0, 1, 1], [], []>} : vector<64x48xbf16>, vector<48x256xbf16>, vector<64x256xf32> -> vector<64x256xf32>
    %cst_4 = arith.constant 0.000000e+00 : f32
    %4 = vector.broadcast %cst_4 : f32 to vector<64x256xf32>
    %5 = arith.maximumf %3, %4 : vector<64x256xf32>
    %6 = arith.truncf %5 : vector<64x256xf32> to vector<64x256xbf16>
    %c0_5 = arith.constant 0 : index
    %c0_6 = arith.constant 0 : index
    %7 = vector.load %arg4[%c0_5, %c0_6] : memref<256x256xbf16, #tpu.memory_space<vmem>>, vector<256x256xbf16>
    %cst_7 = arith.constant dense<0.000000e+00> : vector<64x256xf32>
    %8 = tpu.matmul %6, %7, %cst_7 {dimension_numbers = #tpu.dot_dimension_numbers<[1], [0], [0], [1], [0, 0, 1, 1], [], []>} : vector<64x256xbf16>, vector<256x256xbf16>, vector<64x256xf32> -> vector<64x256xf32>
    %c0_8 = arith.constant 0 : index
    %c0_9 = arith.constant 0 : index
    %9 = vector.load %arg5[%c0_8, %c0_9] : memref<1x256xf32, #tpu.memory_space<vmem>>, vector<1x256xf32>
    %10 = vector.broadcast %9 : vector<1x256xf32> to vector<64x256xf32>
    %11 = arith.addf %8, %10 : vector<64x256xf32>
    %cst_10 = arith.constant 0.000000e+00 : f32
    %12 = vector.broadcast %cst_10 : f32 to vector<64x256xf32>
    %13 = arith.maximumf %11, %12 : vector<64x256xf32>
    %c0_11 = arith.constant 0 : index
    %c0_12 = arith.constant 0 : index
    %14 = vector.load %arg6[%c0_11, %c0_12] : memref<1x256xf32, #tpu.memory_space<vmem>>, vector<1x256xf32>
    %15 = vector.broadcast %14 : vector<1x256xf32> to vector<64x256xf32>
    %16 = arith.mulf %13, %15 : vector<64x256xf32>
    %cst_13 = arith.constant dense<0.000000e+00> : vector<64xf32>
    %17 = vector.multi_reduction <add>, %16, %cst_13 [1] : vector<64x256xf32> to vector<64xf32>
    %18 = vector.shape_cast %17 : vector<64xf32> to vector<64x1xf32>
    %c0_14 = arith.constant 0 : index
    %c0_15 = arith.constant 0 : index
    %19 = vector.load %arg7[%c0_14, %c0_15] : memref<1x256xf32, #tpu.memory_space<vmem>>, vector<1x256xf32>
    %20 = vector.broadcast %19 : vector<1x256xf32> to vector<64x256xf32>
    %21 = arith.mulf %5, %20 : vector<64x256xf32>
    %cst_16 = arith.constant dense<0.000000e+00> : vector<64xf32>
    %22 = vector.multi_reduction <add>, %21, %cst_16 [1] : vector<64x256xf32> to vector<64xf32>
    %23 = vector.shape_cast %22 : vector<64xf32> to vector<64x1xf32>
    %24 = arith.addf %18, %23 : vector<64x1xf32>
    %c0_17 = arith.constant 0 : index
    %c0_18 = arith.constant 0 : index
    %25 = memref.load %arg8[%c0_17, %c0_18] : memref<1x1xf32, #tpu.memory_space<smem>>
    %26 = vector.broadcast %25 : f32 to vector<64x1xf32>
    %27 = arith.addf %24, %26 : vector<64x1xf32>
    %cst_19 = arith.constant 0.000000e+00 : f32
    %28 = vector.broadcast %cst_19 : f32 to vector<64x1xf32>
    %29 = arith.maximumf %27, %28 : vector<64x1xf32>
    %30 = math.absf %27 : vector<64x1xf32>
    %cst_20 = arith.constant 0.000000e+00 : f32
    %31 = vector.broadcast %cst_20 : f32 to vector<64x1xf32>
    %32 = arith.subf %31, %30 : vector<64x1xf32>
    %33 = math.exp %32 : vector<64x1xf32>
    %34 = math.log1p %33 : vector<64x1xf32>
    %35 = arith.addf %29, %34 : vector<64x1xf32>
    %36 = vector.broadcast %35 : vector<64x1xf32> to vector<64x256xf32>
    %37 = arith.mulf %5, %36 : vector<64x256xf32>
    %cst_21 = arith.constant 0.000000e+00 : f32
    %38 = vector.broadcast %cst_21 : f32 to vector<64x256xf32>
    %39 = arith.maximumf %37, %38 : vector<64x256xf32>
    %40 = arith.truncf %39 : vector<64x256xf32> to vector<64x256xbf16>
    %c0_22 = arith.constant 0 : index
    %c0_23 = arith.constant 0 : index
    %c0_24 = arith.constant 0 : index
    %41 = vector.load %arg9[%c0_22, %c0_23, %c0_24] : memref<1x64x256xbf16, #tpu.memory_space<vmem>>, vector<1x64x256xbf16>
    %42 = vector.shape_cast %41 : vector<1x64x256xbf16> to vector<64x256xbf16>
    %43 = vector.shape_cast %40 : vector<64x256xbf16> to vector<1x64x256xbf16>
    tpu.vector_store %arg9[%c0_22, %c0_23, %c0_24], %43 {strides = array<i32>} : memref<1x64x256xbf16, #tpu.memory_space<vmem>>, vector<1x64x256xbf16>,
    %c0_25 = arith.constant 0 : index
    %c0_26 = arith.constant 0 : index
    %c0_27 = arith.constant 0 : index
    %44 = vector.load %arg10[%c0_25, %c0_26, %c0_27] : memref<1x64x1xf32, #tpu.memory_space<vmem>>, vector<1x64x1xf32>
    %45 = vector.shape_cast %44 : vector<1x64x1xf32> to vector<64x1xf32>
    %46 = vector.shape_cast %35 : vector<64x1xf32> to vector<1x64x1xf32>
    tpu.vector_store %arg10[%c0_25, %c0_26, %c0_27], %46 {strides = array<i32>} : memref<1x64x1xf32, #tpu.memory_space<vmem>>, vector<1x64x1xf32>,
    return
  }
  func.func @transform_0(%arg0: i32, %arg1: i32) -> (i32, i32, i32) {
    %c0_i32 = arith.constant 0 : i32
    %c0_i32_0 = arith.constant 0 : i32
    return %arg0, %arg1, %c0_i32 : i32, i32, i32
  }
  func.func @transform_1(%arg0: i32, %arg1: i32) -> (i32, i32) {
    %c0_i32 = arith.constant 0 : i32
    %c0_i32_0 = arith.constant 0 : i32
    %c0_i32_1 = arith.constant 0 : i32
    return %c0_i32, %c0_i32_0 : i32, i32
  }
  func.func @transform_2(%arg0: i32, %arg1: i32) -> (i32, i32) {
    %c0_i32 = arith.constant 0 : i32
    %c0_i32_0 = arith.constant 0 : i32
    %c0_i32_1 = arith.constant 0 : i32
    return %c0_i32, %c0_i32_0 : i32, i32
  }
  func.func @transform_3(%arg0: i32, %arg1: i32) -> (i32, i32) {
    %c0_i32 = arith.constant 0 : i32
    %c0_i32_0 = arith.constant 0 : i32
    %c0_i32_1 = arith.constant 0 : i32
    return %c0_i32, %c0_i32_0 : i32, i32
  }
  func.func @transform_4(%arg0: i32, %arg1: i32) -> (i32, i32) {
    %c0_i32 = arith.constant 0 : i32
    %c0_i32_0 = arith.constant 0 : i32
    %c0_i32_1 = arith.constant 0 : i32
    return %c0_i32, %c0_i32_0 : i32, i32
  }
  func.func @transform_5(%arg0: i32, %arg1: i32) -> (i32, i32) {
    %c0_i32 = arith.constant 0 : i32
    %c0_i32_0 = arith.constant 0 : i32
    %c0_i32_1 = arith.constant 0 : i32
    return %c0_i32, %c0_i32_0 : i32, i32
  }
  func.func @transform_6(%arg0: i32, %arg1: i32) -> (i32, i32) {
    %c0_i32 = arith.constant 0 : i32
    %c0_i32_0 = arith.constant 0 : i32
    %c0_i32_1 = arith.constant 0 : i32
    return %c0_i32, %c0_i32_0 : i32, i32
  }
  func.func @transform_7(%arg0: i32, %arg1: i32) -> (i32, i32, i32) {
    %c0_i32 = arith.constant 0 : i32
    %c0_i32_0 = arith.constant 0 : i32
    return %arg0, %arg1, %c0_i32 : i32, i32, i32
  }
  func.func @transform_8(%arg0: i32, %arg1: i32) -> (i32, i32, i32) {
    %c0_i32 = arith.constant 0 : i32
    %c0_i32_0 = arith.constant 0 : i32
    return %arg0, %arg1, %c0_i32 : i32, i32, i32
  }
}

module attributes {stable_mosaic.version = 11 : i64} {
  func.func @_gcn_kernel(%arg0: i32, %arg1: memref<2x16x256xbf16, #tpu.memory_space<vmem>>, %arg2: memref<2x16x16xf32, #tpu.memory_space<vmem>>, %arg3: memref<256x256xbf16, #tpu.memory_space<vmem>>, %arg4: memref<256x128xbf16, #tpu.memory_space<vmem>>, %arg5: memref<128x128xbf16, #tpu.memory_space<vmem>>, %arg6: memref<128x64xbf16, #tpu.memory_space<vmem>>, %arg7: memref<64x32xbf16, #tpu.memory_space<vmem>>, %arg8: memref<1x32xf32, #tpu.memory_space<vmem>>, %arg9: memref<32x10xbf16, #tpu.memory_space<vmem>>, %arg10: memref<1x10xf32, #tpu.memory_space<vmem>>, %arg11: memref<2x10xf32, #tpu.memory_space<vmem>>) attributes {dimension_semantics = [#tpu.dimension_semantics<parallel>], iteration_bounds = array<i64: 1>, scalar_prefetch = 0 : i64, scratch_operands = 0 : i64, tpu.core_type = #tpu.core_type<tc>, window_params = [{transform_indices = @transform_0, window_bounds = array<i64: 2, 16, 256>}, {transform_indices = @transform_1, window_bounds = array<i64: 2, 16, 16>}, {pipeline_mode = #tpu.pipeline_mode<synchronous>, transform_indices = @transform_2, window_bounds = array<i64: 256, 256>}, {pipeline_mode = #tpu.pipeline_mode<synchronous>, transform_indices = @transform_3, window_bounds = array<i64: 256, 128>}, {pipeline_mode = #tpu.pipeline_mode<synchronous>, transform_indices = @transform_4, window_bounds = array<i64: 128, 128>}, {pipeline_mode = #tpu.pipeline_mode<synchronous>, transform_indices = @transform_5, window_bounds = array<i64: 128, 64>}, {pipeline_mode = #tpu.pipeline_mode<synchronous>, transform_indices = @transform_6, window_bounds = array<i64: 64, 32>}, {pipeline_mode = #tpu.pipeline_mode<synchronous>, transform_indices = @transform_7, window_bounds = array<i64: 1, 32>}, {pipeline_mode = #tpu.pipeline_mode<synchronous>, transform_indices = @transform_8, window_bounds = array<i64: 32, 10>}, {pipeline_mode = #tpu.pipeline_mode<synchronous>, transform_indices = @transform_9, window_bounds = array<i64: 1, 10>}, {transform_indices = @transform_10, window_bounds = array<i64: 2, 10>}]} {
    %c0 = arith.constant 0 : index
    %c0_0 = arith.constant 0 : index
    %c0_1 = arith.constant 0 : index
    %0 = vector.load %arg2[%c0, %c0_0, %c0_1] : memref<2x16x16xf32, #tpu.memory_space<vmem>>, vector<2x16x16xf32>
    %cst = arith.constant dense<0.000000e+00> : vector<2x16xf32>
    %1 = vector.multi_reduction <add>, %0, %cst [2] : vector<2x16x16xf32> to vector<2x16xf32>
    %2 = vector.shape_cast %1 : vector<2x16xf32> to vector<2x16x1xf32>
    %3 = math.rsqrt %2 : vector<2x16x1xf32>
    %4 = vector.broadcast %3 : vector<2x16x1xf32> to vector<2x16x16xf32>
    %5 = arith.mulf %4, %0 : vector<2x16x16xf32>
    %6 = tpu.transpose %3, [0, 2, 1] : vector<2x16x1xf32> -> vector<2x1x16xf32>
    %7 = vector.broadcast %6 : vector<2x1x16xf32> to vector<2x16x16xf32>
    %8 = arith.mulf %5, %7 : vector<2x16x16xf32>
    %9 = arith.truncf %8 : vector<2x16x16xf32> to vector<2x16x16xbf16>
    %c0_2 = arith.constant 0 : index
    %c0_3 = arith.constant 0 : index
    %c0_4 = arith.constant 0 : index
    %10 = vector.load %arg1[%c0_2, %c0_3, %c0_4] : memref<2x16x256xbf16, #tpu.memory_space<vmem>>, vector<2x16x256xbf16>
    "tpu.trace_start"() <{level = 10 : i32, message = "bij,bjc->bic"}> : () -> ()
    %cst_5 = arith.constant dense<0.000000e+00> : vector<2x16x256xf32>
    %11 = tpu.matmul %9, %10, %cst_5 {dimension_numbers = #tpu.dot_dimension_numbers<[2], [1], [1], [2], [0, 0, 0, 1, 1, 2], [0], [0]>} : vector<2x16x16xbf16>, vector<2x16x256xbf16>, vector<2x16x256xf32> -> vector<2x16x256xf32>
    "tpu.trace_stop"() : () -> ()
    %12 = arith.truncf %11 : vector<2x16x256xf32> to vector<2x16x256xbf16>
    %13 = vector.shape_cast %12 : vector<2x16x256xbf16> to vector<32x256xbf16>
    %c0_6 = arith.constant 0 : index
    %c0_7 = arith.constant 0 : index
    %14 = vector.load %arg3[%c0_6, %c0_7] : memref<256x256xbf16, #tpu.memory_space<vmem>>, vector<256x256xbf16>
    %cst_8 = arith.constant dense<0.000000e+00> : vector<32x256xf32>
    %15 = tpu.matmul %13, %14, %cst_8 {dimension_numbers = #tpu.dot_dimension_numbers<[1], [0], [0], [1], [0, 0, 1, 1], [], []>} : vector<32x256xbf16>, vector<256x256xbf16>, vector<32x256xf32> -> vector<32x256xf32>
    %16 = vector.shape_cast %15 : vector<32x256xf32> to vector<2x16x256xf32>
    %cst_9 = arith.constant 0.000000e+00 : f32
    %17 = vector.broadcast %cst_9 : f32 to vector<2x16x256xf32>
    %18 = arith.maximumf %16, %17 : vector<2x16x256xf32>
    %19 = arith.truncf %18 : vector<2x16x256xf32> to vector<2x16x256xbf16>
    "tpu.trace_start"() <{level = 10 : i32, message = "bij,bjc->bic"}> : () -> ()
    %cst_10 = arith.constant dense<0.000000e+00> : vector<2x16x256xf32>
    %20 = tpu.matmul %9, %19, %cst_10 {dimension_numbers = #tpu.dot_dimension_numbers<[2], [1], [1], [2], [0, 0, 0, 1, 1, 2], [0], [0]>} : vector<2x16x16xbf16>, vector<2x16x256xbf16>, vector<2x16x256xf32> -> vector<2x16x256xf32>
    "tpu.trace_stop"() : () -> ()
    %21 = arith.truncf %20 : vector<2x16x256xf32> to vector<2x16x256xbf16>
    %22 = vector.shape_cast %21 : vector<2x16x256xbf16> to vector<32x256xbf16>
    %c0_11 = arith.constant 0 : index
    %c0_12 = arith.constant 0 : index
    %23 = vector.load %arg4[%c0_11, %c0_12] : memref<256x128xbf16, #tpu.memory_space<vmem>>, vector<256x128xbf16>
    %cst_13 = arith.constant dense<0.000000e+00> : vector<32x128xf32>
    %24 = tpu.matmul %22, %23, %cst_13 {dimension_numbers = #tpu.dot_dimension_numbers<[1], [0], [0], [1], [0, 0, 1, 1], [], []>} : vector<32x256xbf16>, vector<256x128xbf16>, vector<32x128xf32> -> vector<32x128xf32>
    %25 = vector.shape_cast %24 : vector<32x128xf32> to vector<2x16x128xf32>
    %cst_14 = arith.constant 0.000000e+00 : f32
    %26 = vector.broadcast %cst_14 : f32 to vector<2x16x128xf32>
    %27 = arith.maximumf %25, %26 : vector<2x16x128xf32>
    %28 = arith.truncf %27 : vector<2x16x128xf32> to vector<2x16x128xbf16>
    "tpu.trace_start"() <{level = 10 : i32, message = "bij,bjc->bic"}> : () -> ()
    %cst_15 = arith.constant dense<0.000000e+00> : vector<2x16x128xf32>
    %29 = tpu.matmul %9, %28, %cst_15 {dimension_numbers = #tpu.dot_dimension_numbers<[2], [1], [1], [2], [0, 0, 0, 1, 1, 2], [0], [0]>} : vector<2x16x16xbf16>, vector<2x16x128xbf16>, vector<2x16x128xf32> -> vector<2x16x128xf32>
    "tpu.trace_stop"() : () -> ()
    %30 = arith.truncf %29 : vector<2x16x128xf32> to vector<2x16x128xbf16>
    %31 = vector.shape_cast %30 : vector<2x16x128xbf16> to vector<32x128xbf16>
    %c0_16 = arith.constant 0 : index
    %c0_17 = arith.constant 0 : index
    %32 = vector.load %arg5[%c0_16, %c0_17] : memref<128x128xbf16, #tpu.memory_space<vmem>>, vector<128x128xbf16>
    %cst_18 = arith.constant dense<0.000000e+00> : vector<32x128xf32>
    %33 = tpu.matmul %31, %32, %cst_18 {dimension_numbers = #tpu.dot_dimension_numbers<[1], [0], [0], [1], [0, 0, 1, 1], [], []>} : vector<32x128xbf16>, vector<128x128xbf16>, vector<32x128xf32> -> vector<32x128xf32>
    %34 = vector.shape_cast %33 : vector<32x128xf32> to vector<2x16x128xf32>
    %cst_19 = arith.constant 0.000000e+00 : f32
    %35 = vector.broadcast %cst_19 : f32 to vector<2x16x128xf32>
    %36 = arith.maximumf %34, %35 : vector<2x16x128xf32>
    %37 = arith.truncf %36 : vector<2x16x128xf32> to vector<2x16x128xbf16>
    "tpu.trace_start"() <{level = 10 : i32, message = "bij,bjc->bic"}> : () -> ()
    %cst_20 = arith.constant dense<0.000000e+00> : vector<2x16x128xf32>
    %38 = tpu.matmul %9, %37, %cst_20 {dimension_numbers = #tpu.dot_dimension_numbers<[2], [1], [1], [2], [0, 0, 0, 1, 1, 2], [0], [0]>} : vector<2x16x16xbf16>, vector<2x16x128xbf16>, vector<2x16x128xf32> -> vector<2x16x128xf32>
    "tpu.trace_stop"() : () -> ()
    %39 = arith.truncf %38 : vector<2x16x128xf32> to vector<2x16x128xbf16>
    %40 = vector.shape_cast %39 : vector<2x16x128xbf16> to vector<32x128xbf16>
    %c0_21 = arith.constant 0 : index
    %c0_22 = arith.constant 0 : index
    %41 = vector.load %arg6[%c0_21, %c0_22] : memref<128x64xbf16, #tpu.memory_space<vmem>>, vector<128x64xbf16>
    %cst_23 = arith.constant dense<0.000000e+00> : vector<32x64xf32>
    %42 = tpu.matmul %40, %41, %cst_23 {dimension_numbers = #tpu.dot_dimension_numbers<[1], [0], [0], [1], [0, 0, 1, 1], [], []>} : vector<32x128xbf16>, vector<128x64xbf16>, vector<32x64xf32> -> vector<32x64xf32>
    %43 = vector.shape_cast %42 : vector<32x64xf32> to vector<2x16x64xf32>
    %cst_24 = arith.constant dense<0.000000e+00> : vector<2x64xf32>
    %44 = vector.multi_reduction <add>, %43, %cst_24 [1] : vector<2x16x64xf32> to vector<2x64xf32>
    %cst_25 = arith.constant 1.600000e+01 : f32
    %45 = vector.broadcast %cst_25 : f32 to vector<2x64xf32>
    %46 = arith.divf %44, %45 : vector<2x64xf32>
    %47 = arith.truncf %46 : vector<2x64xf32> to vector<2x64xbf16>
    %c0_26 = arith.constant 0 : index
    %c0_27 = arith.constant 0 : index
    %48 = vector.load %arg7[%c0_26, %c0_27] : memref<64x32xbf16, #tpu.memory_space<vmem>>, vector<64x32xbf16>
    %cst_28 = arith.constant dense<0.000000e+00> : vector<2x32xf32>
    %49 = tpu.matmul %47, %48, %cst_28 {dimension_numbers = #tpu.dot_dimension_numbers<[1], [0], [0], [1], [0, 0, 1, 1], [], []>} : vector<2x64xbf16>, vector<64x32xbf16>, vector<2x32xf32> -> vector<2x32xf32>
    %c0_29 = arith.constant 0 : index
    %c0_30 = arith.constant 0 : index
    %50 = vector.load %arg8[%c0_29, %c0_30] : memref<1x32xf32, #tpu.memory_space<vmem>>, vector<1x32xf32>
    %51 = vector.broadcast %50 : vector<1x32xf32> to vector<2x32xf32>
    %52 = arith.addf %49, %51 : vector<2x32xf32>
    %53 = arith.truncf %52 : vector<2x32xf32> to vector<2x32xbf16>
    %c0_31 = arith.constant 0 : index
    %c0_32 = arith.constant 0 : index
    %54 = vector.load %arg9[%c0_31, %c0_32] : memref<32x10xbf16, #tpu.memory_space<vmem>>, vector<32x10xbf16>
    %cst_33 = arith.constant dense<0.000000e+00> : vector<2x10xf32>
    %55 = tpu.matmul %53, %54, %cst_33 {dimension_numbers = #tpu.dot_dimension_numbers<[1], [0], [0], [1], [0, 0, 1, 1], [], []>} : vector<2x32xbf16>, vector<32x10xbf16>, vector<2x10xf32> -> vector<2x10xf32>
    %c0_34 = arith.constant 0 : index
    %c0_35 = arith.constant 0 : index
    %56 = vector.load %arg10[%c0_34, %c0_35] : memref<1x10xf32, #tpu.memory_space<vmem>>, vector<1x10xf32>
    %57 = vector.broadcast %56 : vector<1x10xf32> to vector<2x10xf32>
    %58 = arith.addf %55, %57 : vector<2x10xf32>
    %c0_36 = arith.constant 0 : index
    %c0_37 = arith.constant 0 : index
    %59 = vector.load %arg11[%c0_36, %c0_37] : memref<2x10xf32, #tpu.memory_space<vmem>>, vector<2x10xf32>
    tpu.vector_store %arg11[%c0_36, %c0_37], %58 {strides = array<i32>} : memref<2x10xf32, #tpu.memory_space<vmem>>, vector<2x10xf32>,
    return
  }
  func.func @transform_0(%arg0: i32) -> (i32, i32, i32) {
    %c0_i32 = arith.constant 0 : i32
    %c0_i32_0 = arith.constant 0 : i32
    %c0_i32_1 = arith.constant 0 : i32
    return %arg0, %c0_i32, %c0_i32_0 : i32, i32, i32
  }
  func.func @transform_1(%arg0: i32) -> (i32, i32, i32) {
    %c0_i32 = arith.constant 0 : i32
    %c0_i32_0 = arith.constant 0 : i32
    %c0_i32_1 = arith.constant 0 : i32
    return %arg0, %c0_i32, %c0_i32_0 : i32, i32, i32
  }
  func.func @transform_2(%arg0: i32) -> (i32, i32) {
    %c0_i32 = arith.constant 0 : i32
    %c0_i32_0 = arith.constant 0 : i32
    %c0_i32_1 = arith.constant 0 : i32
    return %c0_i32, %c0_i32_0 : i32, i32
  }
  func.func @transform_3(%arg0: i32) -> (i32, i32) {
    %c0_i32 = arith.constant 0 : i32
    %c0_i32_0 = arith.constant 0 : i32
    %c0_i32_1 = arith.constant 0 : i32
    return %c0_i32, %c0_i32_0 : i32, i32
  }
  func.func @transform_4(%arg0: i32) -> (i32, i32) {
    %c0_i32 = arith.constant 0 : i32
    %c0_i32_0 = arith.constant 0 : i32
    %c0_i32_1 = arith.constant 0 : i32
    return %c0_i32, %c0_i32_0 : i32, i32
  }
  func.func @transform_5(%arg0: i32) -> (i32, i32) {
    %c0_i32 = arith.constant 0 : i32
    %c0_i32_0 = arith.constant 0 : i32
    %c0_i32_1 = arith.constant 0 : i32
    return %c0_i32, %c0_i32_0 : i32, i32
  }
  func.func @transform_6(%arg0: i32) -> (i32, i32) {
    %c0_i32 = arith.constant 0 : i32
    %c0_i32_0 = arith.constant 0 : i32
    %c0_i32_1 = arith.constant 0 : i32
    return %c0_i32, %c0_i32_0 : i32, i32
  }
  func.func @transform_7(%arg0: i32) -> (i32, i32) {
    %c0_i32 = arith.constant 0 : i32
    %c0_i32_0 = arith.constant 0 : i32
    %c0_i32_1 = arith.constant 0 : i32
    return %c0_i32, %c0_i32_0 : i32, i32
  }
  func.func @transform_8(%arg0: i32) -> (i32, i32) {
    %c0_i32 = arith.constant 0 : i32
    %c0_i32_0 = arith.constant 0 : i32
    %c0_i32_1 = arith.constant 0 : i32
    return %c0_i32, %c0_i32_0 : i32, i32
  }
  func.func @transform_9(%arg0: i32) -> (i32, i32) {
    %c0_i32 = arith.constant 0 : i32
    %c0_i32_0 = arith.constant 0 : i32
    %c0_i32_1 = arith.constant 0 : i32
    return %c0_i32, %c0_i32_0 : i32, i32
  }
  func.func @transform_10(%arg0: i32) -> (i32, i32) {
    %c0_i32 = arith.constant 0 : i32
    %c0_i32_0 = arith.constant 0 : i32
    return %arg0, %c0_i32 : i32, i32
  }
}

</mosaic_0001>

<llo_original>
// kernel: attn_graph_forward.2
$region0: #{attn_graph_forward.2}
  #allocation0 [shape = 'u32[]', space=smem, size = 0x4, offset = 0x4, fixed_abs, tag = 'smem constant byte address 0x4 - core index']
  #allocation1 [shape = 'u32[144,128]{1,0:T(1,128)}', space=vmem, size = 0x12000, scoped, tag = 'internal scratch']
  #allocation2 [shape = 'f32[1,1]{1,0:T(1,128)S(6)}', space=smem, size = 0x200, scoped, tag = 'scoped memory for attn_graph_forward.2']
  %s0 = inlined_call_operand.vmem [shape: bf16[2,64,48], index: 0, kind: input, shape index: {}]
  %s1 = inlined_call_operand.vmem [shape: bf16[48,256], index: 1, kind: input, shape index: {}]
  %s2 = inlined_call_operand.vmem [shape: bf16[256,256], index: 2, kind: input, shape index: {}]
  %s3 = inlined_call_operand.vmem [shape: f32[1,256], index: 3, kind: input, shape index: {}]
  %s4 = inlined_call_operand.vmem [shape: f32[1,256], index: 4, kind: input, shape index: {}]
  %s5 = inlined_call_operand.vmem [shape: f32[1,256], index: 5, kind: input, shape index: {}]
  %s6 = inlined_call_operand.<no memory space> [shape: f32[1,1], index: 6, kind: input, shape index: {}]
  %s7 = inlined_call_operand.vmem [shape: bf16[2,64,256], index: 7, kind: output, shape index: {0}]
  %s8 = inlined_call_operand.vmem [shape: f32[2,64,1], index: 8, kind: output, shape index: {1}]
  %9 = xla_tuple %s7, %s8
  %s10 = sld [smem:[#allocation0]]
  $region69: #{attn_graph_forward.2} parent=0
    _
  %s12 = ssub.s32 1, %s10
  %s13 = scalar_select 0, %s12, %s10
  %14 = sst [smem:[#allocation2]] %s6
  loop: start=0, step=1, limit=4
  $region2: #{attn_graph_forward.2} parent=0 // loop_pre_header
    _
  $region3: #{attn_graph_forward.2} parent=0 // loop_header
    %s16 = sphi 0, %s20
    %p17 = scmp.ge.s32.totalorder %s16, 4
    %s23 = sphi 0, %s35
    %s24 = sphi 0, %s31
    %s25 = sphi 0, %s23
    %s26 = sphi 0, %s24
    %s27 = sphi 0, %s25
    %s28 = sphi 0, %s26
    %s40 = sphi 0, %s42
    %s43 = sphi 0, %s40
    %s44 = sphi 0, %s43
    %s60 = sphi 0, %s44
    %s64 = sphi 0, %s64
    %s66 = sphi 0, %s64
    %s67 = sphi 0, %s66
    %s81 = sphi 0, %s67
    %s85 = sphi 0, %s85
    %s87 = sphi 0, %s85
    %s88 = sphi 0, %s87
    %s102 = sphi 0, %s88
    %s106 = sphi 0, %s106
    %s108 = sphi 0, %s106
    %s109 = sphi 0, %s108
    %s123 = sphi 0, %s109
    %s127 = sphi 0, %s127
    %s129 = sphi 0, %s127
    %s130 = sphi 0, %s129
    %s144 = sphi 0, %s130
    %s148 = sphi 0, %s148
    %s150 = sphi 0, %s148
    %s151 = sphi 0, %s150
    %s165 = sphi 0, %s151
    %s169 = sphi 0, %s169
    %s171 = sphi 0, %s169
    %s172 = sphi 0, %s171
    %s186 = sphi 0, %s172
    %s194 = sphi 0, %s196
    %s197 = sphi 0, %s194
    %s198 = sphi 0, %s197
    %s214 = sphi 0, %s198
    %s222 = sphi 0, %s224
    %s225 = sphi 0, %s222
    %s226 = sphi 0, %s225
    %s242 = sphi 0, %s226
  $region4: #{attn_graph_forward.2} parent=0 // loop_header_branch
    %19 = sbr.rel (%p17) target = $region8
  $region5: #{attn_graph_forward.2} parent=0 // loop_body
    %s21 = ssub.s32 %s16, 1
    %s22 = ssub.s32 %s16, 2
    %s29 = sadd.s32 1, %s24
    %p30 = scmp.ge.s32.totalorder %s29, 1
    %s31 = scalar_select %p30, 0, %s29
    %s32 = sadd.s32 1, %s23
    %s33 = scalar_select %p30, %s32, %s23
    %p34 = scmp.ge.s32.totalorder %s33, 2
    %s35 = scalar_select %p34, 0, %s33
    %s36 = ssub.s32 %s23, %s35
    %s37 = ssub.s32 %s24, %s31
    %s38 = sor.u32 %s36, %s37
    %p39 = scmp.eq.s32.totalorder %s38, 0
    %s41 = sadd.s32 %s40, 1
    %s42 = scalar_select %p39, %s40, %s41
    %p45 = pneg %p39
    %p46 = scmp.eq.s32.totalorder %s16, 1
    %p47 = por %p45, %p46
    %p48 = scmp.ne.s32.totalorder %s40, %s43
    %p49 = scmp.eq.s32.totalorder %s16, 0
    %p50 = por %p48, %p49
    %p51 = scmp.ne.s32.totalorder %s40, %s43
    %p52 = scmp.eq.s32.totalorder %s21, 1
    %p53 = por %p51, %p52
    %p54 = scmp.ne.s32.totalorder %s43, %s44
    %p55 = scmp.eq.s32.totalorder %s21, 0
    %p56 = por %p54, %p55
    %p57 = scmp.ne.s32.totalorder %s43, %s44
    %p58 = scmp.eq.s32.totalorder %s22, 1
    %p59 = por %p57, %p58
    %p61 = scmp.ne.s32.totalorder %s44, %s60
    %p62 = scmp.eq.s32.totalorder %s22, 0
    %p63 = por %p61, %p62
    %s65 = sadd.s32 %s64, 1
    %p68 = scmp.eq.s32.totalorder %s16, 1
    %p69 = scmp.ne.s32.totalorder %s64, %s66
    %p70 = scmp.eq.s32.totalorder %s16, 0
    %p71 = por %p69, %p70
    %p72 = scmp.ne.s32.totalorder %s64, %s66
    %p73 = scmp.eq.s32.totalorder %s21, 1
    %p74 = por %p72, %p73
    %p75 = scmp.ne.s32.totalorder %s66, %s67
    %p76 = scmp.eq.s32.totalorder %s21, 0
    %p77 = por %p75, %p76
    %p78 = scmp.ne.s32.totalorder %s66, %s67
    %p79 = scmp.eq.s32.totalorder %s22, 1
    %p80 = por %p78, %p79
    %p82 = scmp.ne.s32.totalorder %s67, %s81
    %p83 = scmp.eq.s32.totalorder %s22, 0
    %p84 = por %p82, %p83
    %s86 = sadd.s32 %s85, 1
    %p89 = scmp.eq.s32.totalorder %s16, 1
    %p90 = scmp.ne.s32.totalorder %s85, %s87
    %p91 = scmp.eq.s32.totalorder %s16, 0
    %p92 = por %p90, %p91
    %p93 = scmp.ne.s32.totalorder %s85, %s87
    %p94 = scmp.eq.s32.totalorder %s21, 1
    %p95 = por %p93, %p94
    %p96 = scmp.ne.s32.totalorder %s87, %s88
    %p97 = scmp.eq.s32.totalorder %s21, 0
    %p98 = por %p96, %p97
    %p99 = scmp.ne.s32.totalorder %s87, %s88
    %p100 = scmp.eq.s32.totalorder %s22, 1
    %p101 = por %p99, %p100
    %p103 = scmp.ne.s32.totalorder %s88, %s102
    %p104 = scmp.eq.s32.totalorder %s22, 0
    %p105 = por %p103, %p104
    %s107 = sadd.s32 %s106, 1
    %p110 = scmp.eq.s32.totalorder %s16, 1
    %p111 = scmp.ne.s32.totalorder %s106, %s108
    %p112 = scmp.eq.s32.totalorder %s16, 0
    %p113 = por %p111, %p112
    %p114 = scmp.ne.s32.totalorder %s106, %s108
    %p115 = scmp.eq.s32.totalorder %s21, 1
    %p116 = por %p114, %p115
    %p117 = scmp.ne.s32.totalorder %s108, %s109
    %p118 = scmp.eq.s32.totalorder %s21, 0
    %p119 = por %p117, %p118
    %p120 = scmp.ne.s32.totalorder %s108, %s109
    %p121 = scmp.eq.s32.totalorder %s22, 1
    %p122 = por %p120, %p121
    %p124 = scmp.ne.s32.totalorder %s109, %s123
    %p125 = scmp.eq.s32.totalorder %s22, 0
    %p126 = por %p124, %p125
    %s128 = sadd.s32 %s127, 1
    %p131 = scmp.eq.s32.totalorder %s16, 1
    %p132 = scmp.ne.s32.totalorder %s127, %s129
    %p133 = scmp.eq.s32.totalorder %s16, 0
    %p134 = por %p132, %p133
    %p135 = scmp.ne.s32.totalorder %s127, %s129
    %p136 = scmp.eq.s32.totalorder %s21, 1
    %p137 = por %p135, %p136
    %p138 = scmp.ne.s32.totalorder %s129, %s130
    %p139 = scmp.eq.s32.totalorder %s21, 0
    %p140 = por %p138, %p139
    %p141 = scmp.ne.s32.totalorder %s129, %s130
    %p142 = scmp.eq.s32.totalorder %s22, 1
    %p143 = por %p141, %p142
    %p145 = scmp.ne.s32.totalorder %s130, %s144
    %p146 = scmp.eq.s32.totalorder %s22, 0
    %p147 = por %p145, %p146
    %s149 = sadd.s32 %s148, 1
    %p152 = scmp.eq.s32.totalorder %s16, 1
    %p153 = scmp.ne.s32.totalorder %s148, %s150
    %p154 = scmp.eq.s32.totalorder %s16, 0
    %p155 = por %p153, %p154
    %p156 = scmp.ne.s32.totalorder %s148, %s150
    %p157 = scmp.eq.s32.totalorder %s21, 1
    %p158 = por %p156, %p157
    %p159 = scmp.ne.s32.totalorder %s150, %s151
    %p160 = scmp.eq.s32.totalorder %s21, 0
    %p161 = por %p159, %p160
    %p162 = scmp.ne.s32.totalorder %s150, %s151
    %p163 = scmp.eq.s32.totalorder %s22, 1
    %p164 = por %p162, %p163
    %p166 = scmp.ne.s32.totalorder %s151, %s165
    %p167 = scmp.eq.s32.totalorder %s22, 0
    %p168 = por %p166, %p167
    %s170 = sadd.s32 %s169, 1
    %p173 = scmp.eq.s32.totalorder %s16, 1
    %p174 = scmp.ne.s32.totalorder %s169, %s171
    %p175 = scmp.eq.s32.totalorder %s16, 0
    %p176 = por %p174, %p175
    %p177 = scmp.ne.s32.totalorder %s169, %s171
    %p178 = scmp.eq.s32.totalorder %s21, 1
    %p179 = por %p177, %p178
    %p180 = scmp.ne.s32.totalorder %s171, %s172
    %p181 = scmp.eq.s32.totalorder %s21, 0
    %p182 = por %p180, %p181
    %p183 = scmp.ne.s32.totalorder %s171, %s172
    %p184 = scmp.eq.s32.totalorder %s22, 1
    %p185 = por %p183, %p184
    %p187 = scmp.ne.s32.totalorder %s172, %s186
    %p188 = scmp.eq.s32.totalorder %s22, 0
    %p189 = por %p187, %p188
    %s190 = ssub.s32 %s23, %s35
    %s191 = ssub.s32 %s24, %s31
    %s192 = sor.u32 %s190, %s191
    %p193 = scmp.eq.s32.totalorder %s192, 0
    %s195 = sadd.s32 %s194, 1
    %s196 = scalar_select %p193, %s194, %s195
    %p199 = pneg %p193
    %p200 = scmp.eq.s32.totalorder %s16, 1
    %p201 = por %p199, %p200
    %p202 = scmp.ne.s32.totalorder %s194, %s197
    %p203 = scmp.eq.s32.totalorder %s16, 0
    %p204 = por %p202, %p203
    %p205 = scmp.ne.s32.totalorder %s194, %s197
    %p206 = scmp.eq.s32.totalorder %s21, 1
    %p207 = por %p205, %p206
    %p208 = scmp.ne.s32.totalorder %s197, %s198
    %p209 = scmp.eq.s32.totalorder %s21, 0
    %p210 = por %p208, %p209
    %p211 = scmp.ne.s32.totalorder %s197, %s198
    %p212 = scmp.eq.s32.totalorder %s22, 1
    %p213 = por %p211, %p212
    %p215 = scmp.ne.s32.totalorder %s198, %s214
    %p216 = scmp.eq.s32.totalorder %s22, 0
    %p217 = por %p215, %p216
    %s218 = ssub.s32 %s23, %s35
    %s219 = ssub.s32 %s24, %s31
    %s220 = sor.u32 %s218, %s219
    %p221 = scmp.eq.s32.totalorder %s220, 0
    %s223 = sadd.s32 %s222, 1
    %s224 = scalar_select %p221, %s222, %s223
    %p227 = pneg %p221
    %p228 = scmp.eq.s32.totalorder %s16, 1
    %p229 = por %p227, %p228
    %p230 = scmp.ne.s32.totalorder %s222, %s225
    %p231 = scmp.eq.s32.totalorder %s16, 0
    %p232 = por %p230, %p231
    %p233 = scmp.ne.s32.totalorder %s222, %s225
    %p234 = scmp.eq.s32.totalorder %s21, 1
    %p235 = por %p233, %p234
    %p236 = scmp.ne.s32.totalorder %s225, %s226
    %p237 = scmp.eq.s32.totalorder %s21, 0
    %p238 = por %p236, %p237
    %p239 = scmp.ne.s32.totalorder %s225, %s226
    %p240 = scmp.eq.s32.totalorder %s22, 1
    %p241 = por %p239, %p240
    %p243 = scmp.ne.s32.totalorder %s226, %s242
    %p244 = scmp.eq.s32.totalorder %s22, 0
    %p245 = por %p243, %p244
    %p246 = scmp.le.s32.totalorder 1, %s16
    %p247 = scmp.lt.s32.totalorder %s16, 3
    %p248 = pnand %p246, %p247
    %p249 = pneg %p248
    // Predicated region
    $region9: #{attn_graph_forward.2} parent=5 // pred_check
      _
    $region10: #{attn_graph_forward.2} parent=5 // pred_check_branch
      %251 = sbr.rel (%p248) target = $region12
    $region11: #{attn_graph_forward.2} parent=5 // pred_region
      %s252 = ssub.s32 %s16, 1
      // Predicated region
      $region13: #{attn_graph_forward.2} parent=11 // pred_check
        %p253 = pneg %p77
      $region14: #{attn_graph_forward.2} parent=11 // pred_check_branch
        %255 = sbr.rel (%p253) target = $region16
      $region15: #{attn_graph_forward.2} parent=11 // pred_region
        _
      $region16: #{attn_graph_forward.2} parent=11 // pred_fallthru
        _
      // Predicated region
      $region17: #{attn_graph_forward.2} parent=11 // pred_check
        %p256 = pneg %p98
      $region18: #{attn_graph_forward.2} parent=11 // pred_check_branch
        %258 = sbr.rel (%p256) target = $region20
      $region19: #{attn_graph_forward.2} parent=11 // pred_region
        _
      $region20: #{attn_graph_forward.2} parent=11 // pred_fallthru
        _
      // Predicated region
      $region21: #{attn_graph_forward.2} parent=11 // pred_check
        %p259 = pneg %p119
      $region22: #{attn_graph_forward.2} parent=11 // pred_check_branch
        %261 = sbr.rel (%p259) target = $region24
      $region23: #{attn_graph_forward.2} parent=11 // pred_region
        _
      $region24: #{attn_graph_forward.2} parent=11 // pred_fallthru
        _
      // Predicated region
      $region25: #{attn_graph_forward.2} parent=11 // pred_check
        %p262 = pneg %p140
      $region26: #{attn_graph_forward.2} parent=11 // pred_check_branch
        %264 = sbr.rel (%p262) target = $region28
      $region27: #{attn_graph_forward.2} parent=11 // pred_region
        _
      $region28: #{attn_graph_forward.2} parent=11 // pred_fallthru
        _
      // Predicated region
      $region29: #{attn_graph_forward.2} parent=11 // pred_check
        %p265 = pneg %p161
      $region30: #{attn_graph_forward.2} parent=11 // pred_check_branch
        %267 = sbr.rel (%p265) target = $region32
      $region31: #{attn_graph_forward.2} parent=11 // pred_region
        _
      $region32: #{attn_graph_forward.2} parent=11 // pred_fallthru
        _
      // Predicated region
      $region33: #{attn_graph_forward.2} parent=11 // pred_check
        %p268 = pneg %p182
      $region34: #{attn_graph_forward.2} parent=11 // pred_check_branch
        %270 = sbr.rel (%p268) target = $region36
      $region35: #{attn_graph_forward.2} parent=11 // pred_region
        _
      $region36: #{attn_graph_forward.2} parent=11 // pred_fallthru
        _
    $region12: #{attn_graph_forward.2} parent=5 // pred_fallthru
      _
    %p271 = scmp.lt.s32.totalorder %s16, 2
    // Predicated region
    $region37: #{attn_graph_forward.2} parent=5 // pred_check
      %p272 = pneg %p271
    $region38: #{attn_graph_forward.2} parent=5 // pred_check_branch
      %274 = sbr.rel (%p272) target = $region40
    $region39: #{attn_graph_forward.2} parent=5 // pred_region
      // Predicated region
      $region41: #{attn_graph_forward.2} parent=39 // pred_check
        %p275 = pneg %p50
      $region42: #{attn_graph_forward.2} parent=39 // pred_check_branch
        %277 = sbr.rel (%p275) target = $region44
      $region43: #{attn_graph_forward.2} parent=39 // pred_region
        %s278 = smul.u32 8, %s24
        %p279 = scmp.lt.s32.totalorder %s23, 1
        %s280 = scalar_select %p279, %s23, 1
        %p281 = scmp.lt.s32.totalorder %s278, 7
        %s282 = scalar_select %p281, %s278, 7
        %s283 = smul.addr %s280, 8
        %s284 = sadd.s32 %s282, %s283
        %s285 = smul.addr %s284, 4
        %s286 = scalar_lea.vmem %s0, %s285
        %s287 = smul.u32 8, %s24
      $region44: #{attn_graph_forward.2} parent=39 // pred_fallthru
        _
    $region40: #{attn_graph_forward.2} parent=5 // pred_fallthru
      _
    %p288 = scmp.le.s32.totalorder 1, %s16
    %p289 = scmp.lt.s32.totalorder %s16, 3
    %p290 = pnand %p288, %p289
    %p291 = pneg %p290
    // Predicated region
    $region45: #{attn_graph_forward.2} parent=5 // pred_check
      _
    $region46: #{attn_graph_forward.2} parent=5 // pred_check_branch
      %293 = sbr.rel (%p290) target = $region48
    $region47: #{attn_graph_forward.2} parent=5 // pred_region
      %s294 = ssub.s32 %s16, 1
      %s295 = smul.u32 8, %s26
      %p296 = scmp.lt.s32.totalorder %s25, 1
      %s297 = scalar_select %p296, %s25, 1
      %p298 = scmp.lt.s32.totalorder %s295, 7
      %s299 = scalar_select %p298, %s295, 7
      %s300 = smul.addr %s297, 8
      %s301 = sadd.s32 %s299, %s300
      %s302 = smul.addr %s301, 4
      %s303 = scalar_lea.vmem %s0, %s302
      %p304 = pneg %p56
      %p305 = pneg %p53
      %p306 = pneg %p77
      %p307 = pneg %p74
      %p308 = pneg %p98
      %p309 = pneg %p95
      %p310 = pneg %p119
      %p311 = pneg %p116
      %p312 = pneg %p140
      %p313 = pneg %p137
      %p314 = pneg %p161
      %p315 = pneg %p158
      %p316 = pneg %p182
      %p317 = pneg %p179
      %p318 = pneg %p210
      %p319 = pneg %p207
      %s320 = smul.u32 8, %s26
      %p321 = scmp.lt.s32.totalorder %s25, 1
      %s322 = scalar_select %p321, %s25, 1
      %p323 = scmp.lt.s32.totalorder %s320, 7
      %s324 = scalar_select %p323, %s320, 7
      %s325 = smul.addr %s324, 2
      %s326 = smul.addr %s322, 16
      %s327 = sadd.s32 %s325, %s326
      %s328 = smul.addr %s327, 4
      %s329 = scalar_lea.vmem %s7, %s328
      %p330 = pneg %p238
      %p331 = pneg %p235
      %s332 = smul.u32 8, %s26
      %p333 = scmp.lt.s32.totalorder %s25, 1
      %s334 = scalar_select %p333, %s25, 1
      %p335 = scmp.lt.s32.totalorder %s332, 7
      %s336 = scalar_select %p335, %s332, 7
      %s337 = smul.addr %s334, 8
      %s338 = sadd.s32 %s336, %s337
      %s339 = smul.addr %s338, 8
      %s340 = scalar_lea.vmem %s8, %s339
      %s341 = smul.u32 8, %s26
      %p342 = scmp.lt.s32.totalorder %s25, 1
      %s343 = scalar_select %p342, %s25, 1
      %p344 = scmp.lt.s32.totalorder %s341, 7
      %s345 = scalar_select %p344, %s341, 7
      %s346 = smul.addr %s343, 8
      %s347 = sadd.s32 %s345, %s346
      %s348 = smul.addr %s347, 4
      %s349 = scalar_lea.vmem %s0, %s348
      %s350 = smul.u32 8, %s26
      %s351 = smul.u32 8, %s26
      %p352 = scmp.lt.s32.totalorder %s25, 1
      %s353 = scalar_select %p352, %s25, 1
      %p354 = scmp.lt.s32.totalorder %s351, 7
      %s355 = scalar_select %p354, %s351, 7
      %s356 = smul.addr %s355, 2
      %s357 = smul.addr %s353, 16
      %s358 = sadd.s32 %s356, %s357
      %s359 = smul.addr %s358, 4
      %s360 = scalar_lea.vmem %s7, %s359
      %s361 = smul.u32 8, %s26
      %s362 = smul.u32 8, %s26
      %p363 = scmp.lt.s32.totalorder %s25, 1
      %s364 = scalar_select %p363, %s25, 1
      %p365 = scmp.lt.s32.totalorder %s362, 7
      %s366 = scalar_select %p365, %s362, 7
      %s367 = smul.addr %s364, 8
      %s368 = sadd.s32 %s366, %s367
      %s369 = smul.addr %s368, 8
      %s370 = scalar_lea.vmem %s8, %s369
      %s371 = smul.u32 8, %s26
      %v373 = vld [vmem:[%s349] sm:$0xf]
      %v374 = vld [vmem:[%s349 + $0x4] sm:$0xf]
      %v375 = vld [vmem:[%s349 + $0x8] sm:$0xf]
      %v376 = vld [vmem:[%s349 + $0xc] sm:$0xf]
      %v377 = vld [vmem:[%s349 + $0x10] sm:$0xf]
      %v378 = vld [vmem:[%s349 + $0x14] sm:$0xf]
      %v379 = vld [vmem:[%s349 + $0x18] sm:$0xf]
      %v380 = vld [vmem:[%s349 + $0x1c] sm:$0xf]
      %v381 = vld [vmem:[%s1] sm:$0xff]
      %v382 = vld [vmem:[%s1 + $0x8] sm:$0xff]
      %v383 = vld [vmem:[%s1 + $0x10] sm:$0xff]
      %v384 = vld [vmem:[%s1 + $0x18] sm:$0xff]
      %v385 = vld [vmem:[%s1 + $0x20] sm:$0xff]
      %v386 = vld [vmem:[%s1 + $0x28] sm:$0xff]
      %v395 = vunpack.c.l.b16 %v373
      %v396 = vunpack.c.l.b16 %v374
      %v397 = vunpack.c.l.b16 %v375
      %v398 = vunpack.c.l.b16 %v376
      %v399 = vunpack.c.l.b16 %v377
      %v400 = vunpack.c.l.b16 %v378
      %v401 = vunpack.c.l.b16 %v379
      %v402 = vunpack.c.l.b16 %v380
      %v403 = vpack.c.b16 %v396, %v395
      %v404 = vpack.c.b16 %v398, %v397
      %v405 = vpack.c.b16 %v400, %v399
      %v406 = vpack.c.b16 %v402, %v401
      %v413 = vunpack.c.l.b16 %v381
      %v414 = vunpack.c.h.b16 %v381
      %v415 = vunpack.c.l.b16 %v382
      %v416 = vunpack.c.h.b16 %v382
      %v417 = vunpack.c.l.b16 %v383
      %v418 = vunpack.c.h.b16 %v383
      %v419 = vunpack.c.l.b16 %v384
      %v420 = vunpack.c.h.b16 %v384
      %v421 = vunpack.c.l.b16 %v385
      %v422 = vunpack.c.h.b16 %v385
      %v423 = vunpack.c.l.b16 %v386
      %v424 = vunpack.c.h.b16 %v386
      %v425 = vpack.c.b16 %v415, %v413
      %v426 = vpack.c.b16 %v416, %v414
      %v427 = vpack.c.b16 %v419, %v417
      %v428 = vpack.c.b16 %v420, %v418
      %v429 = vpack.c.b16 %v423, %v421
      %v430 = vpack.c.b16 %v424, %v422
      %vm437 = vcmask 392192
      %v439 = vsel %vm437, %v403, 0
      %v442 = vsel %vm437, %v404, 0
      %v445 = vsel %vm437, %v405, 0
      %v448 = vsel %vm437, %v406, 0
      %450 = vmatprep.subr.bf16.mxu0 %v426
      %451 = vmatpush1.bf16.msra.mxu0 %v425
      %452 = vmatprep.subr.bf16.mxu0 %v428
      %453 = vmatpush1.bf16.msra.mxu0 %v427
      %454 = vmatprep.subr.bf16.mxu0 %v430
      %455 = vmatpush1.bf16.msra.mxu0 %v429
      %456 = vmatprep.subr.bf16.mxu0 0
      %457 = vmatpush1.bf16.msra.mxu0 0
      %458 = vmatprep.subr.bf16.mxu0 0
      %459 = vmatpush1.bf16.msra.mxu0 0
      %460 = vmatprep.subr.bf16.mxu0 0
      %461 = vmatpush1.bf16.msra.mxu0 0
      %462 = vmatprep.subr.bf16.mxu0 0
      %463 = vmatpush1.bf16.msra.mxu0 0
      %464 = vmatprep.subr.bf16.mxu0 0
      %465 = vmatpush1.bf16.msra.mxu0 0
      %466 = vmatprep.subr.bf16.mxu0 0
      %467 = vmatpush1.bf16.msra.mxu0 0
      %468 = vmatprep.subr.bf16.mxu0 0
      %469 = vmatpush1.bf16.msra.mxu0 0
      %470 = vmatprep.subr.bf16.mxu0 0
      %471 = vmatpush1.bf16.msra.mxu0 0
      %472 = vmatprep.subr.bf16.mxu0 0
      %473 = vmatpush1.bf16.msra.mxu0 0
      %474 = vmatprep.subr.bf16.mxu0 0
      %475 = vmatpush1.bf16.msra.mxu0 0
      %476 = vmatprep.subr.bf16.mxu0 0
      %477 = vmatpush1.bf16.msra.mxu0 0
      %478 = vmatprep.subr.bf16.mxu0 0
      %479 = vmatpush1.bf16.msra.mxu0 0
      %480 = vmatprep.subr.bf16.mxu0 0
      %481 = vmatpush1.bf16.msra.mxu0 0
      %482 = vmatprep.mubr.bf16.mxu0 0
      %483 = vmatmul.mubr.bf16.gmra.mrb[0].mxu0 %v439
      %v484 = vpop.f32.mrb[0].mxu0
      %v485 = vadd.f32 0.0, %v484
      %v486 = vpop.f32.mrb[0].mxu0
      %v487 = vadd.f32 0.0, %v486
      %v488 = vpop.f32.mrb[0].mxu0
      %v489 = vadd.f32 0.0, %v488
      %v490 = vpop.f32.mrb[0].mxu0
      %v491 = vadd.f32 0.0, %v490
      %492 = vmatprep.mubr.bf16.mxu0 0
      %493 = vmatmul.mubr.bf16.gmra.mrb[0].mxu0 %v442
      %v494 = vpop.f32.mrb[0].mxu0
      %v495 = vadd.f32 0.0, %v494
      %v496 = vpop.f32.mrb[0].mxu0
      %v497 = vadd.f32 0.0, %v496
      %v498 = vpop.f32.mrb[0].mxu0
      %v499 = vadd.f32 0.0, %v498
      %v500 = vpop.f32.mrb[0].mxu0
      %v501 = vadd.f32 0.0, %v500
      %502 = vmatprep.mubr.bf16.mxu0 0
      %503 = vmatmul.mubr.bf16.gmra.mrb[0].mxu0 %v445
      %v504 = vpop.f32.mrb[0].mxu0
      %v505 = vadd.f32 0.0, %v504
      %v506 = vpop.f32.mrb[0].mxu0
      %v507 = vadd.f32 0.0, %v506
      %v508 = vpop.f32.mrb[0].mxu0
      %v509 = vadd.f32 0.0, %v508
      %v510 = vpop.f32.mrb[0].mxu0
      %v511 = vadd.f32 0.0, %v510
      %512 = vmatprep.mubr.bf16.mxu0 0
      %513 = vmatmul.mubr.bf16.gmra.mrb[0].mxu0 %v448
      %v514 = vpop.f32.mrb[0].mxu0
      %v515 = vadd.f32 0.0, %v514
      %v516 = vpop.f32.mrb[0].mxu0
      %v517 = vadd.f32 0.0, %v516
      %v518 = vpop.f32.mrb[0].mxu0
      %v519 = vadd.f32 0.0, %v518
      %v520 = vpop.f32.mrb[0].mxu0
      %v521 = vadd.f32 0.0, %v520
      %522 = vdwg.mxu0
      %v523 = vmax.f32 %v485, 0.0
      %v524 = vmax.f32 %v487, 0.0
      %v525 = vmax.f32 %v489, 0.0
      %v526 = vmax.f32 %v491, 0.0
      %v527 = vmax.f32 %v495, 0.0
      %v528 = vmax.f32 %v497, 0.0
      %v529 = vmax.f32 %v499, 0.0
      %v530 = vmax.f32 %v501, 0.0
      %v531 = vmax.f32 %v505, 0.0
      %v532 = vmax.f32 %v507, 0.0
      %v533 = vmax.f32 %v509, 0.0
      %v534 = vmax.f32 %v511, 0.0
      %v535 = vmax.f32 %v515, 0.0
      %v536 = vmax.f32 %v517, 0.0
      %v537 = vmax.f32 %v519, 0.0
      %v538 = vmax.f32 %v521, 0.0
      %v539 = vpack.c.bf16 %v525, %v523
      %v540 = vpack.c.bf16 %v526, %v524
      %v541 = vpack.c.bf16 %v529, %v527
      %v542 = vpack.c.bf16 %v530, %v528
      %v543 = vpack.c.bf16 %v533, %v531
      %v544 = vpack.c.bf16 %v534, %v532
      %v545 = vpack.c.bf16 %v537, %v535
      %v546 = vpack.c.bf16 %v538, %v536
      %v547 = vld [vmem:[%s2] sm:$0xff]
      %v548 = vld [vmem:[%s2 + $0x8] sm:$0xff]
      %v549 = vld [vmem:[%s2 + $0x10] sm:$0xff]
      %v550 = vld [vmem:[%s2 + $0x18] sm:$0xff]
      %v551 = vld [vmem:[%s2 + $0x20] sm:$0xff]
      %v552 = vld [vmem:[%s2 + $0x28] sm:$0xff]
      %v553 = vld [vmem:[%s2 + $0x30] sm:$0xff]
      %v554 = vld [vmem:[%s2 + $0x38] sm:$0xff]
      %v555 = vld [vmem:[%s2 + $0x40] sm:$0xff]
      %v556 = vld [vmem:[%s2 + $0x48] sm:$0xff]
      %v557 = vld [vmem:[%s2 + $0x50] sm:$0xff]
      %v558 = vld [vmem:[%s2 + $0x58] sm:$0xff]
      %v559 = vld [vmem:[%s2 + $0x60] sm:$0xff]
      %v560 = vld [vmem:[%s2 + $0x68] sm:$0xff]
      %v561 = vld [vmem:[%s2 + $0x70] sm:$0xff]
      %v562 = vld [vmem:[%s2 + $0x78] sm:$0xff]
      %v563 = vld [vmem:[%s2 + $0x80] sm:$0xff]
      %v564 = vld [vmem:[%s2 + $0x88] sm:$0xff]
      %v565 = vld [vmem:[%s2 + $0x90] sm:$0xff]
      %v566 = vld [vmem:[%s2 + $0x98] sm:$0xff]
      %v567 = vld [vmem:[%s2 + $0xa0] sm:$0xff]
      %v568 = vld [vmem:[%s2 + $0xa8] sm:$0xff]
      %v569 = vld [vmem:[%s2 + $0xb0] sm:$0xff]
      %v570 = vld [vmem:[%s2 + $0xb8] sm:$0xff]
      %v571 = vld [vmem:[%s2 + $0xc0] sm:$0xff]
      %v572 = vld [vmem:[%s2 + $0xc8] sm:$0xff]
      %v573 = vld [vmem:[%s2 + $0xd0] sm:$0xff]
      %v574 = vld [vmem:[%s2 + $0xd8] sm:$0xff]
      %v575 = vld [vmem:[%s2 + $0xe0] sm:$0xff]
      %v576 = vld [vmem:[%s2 + $0xe8] sm:$0xff]
      %v577 = vld [vmem:[%s2 + $0xf0] sm:$0xff]
      %v578 = vld [vmem:[%s2 + $0xf8] sm:$0xff]
      %v579 = vld [vmem:[%s3] sm:$0x3]
      %v581 = vlaneseq
      %v582 = vshrl.u32 %v581, 7
      %v583 = vsub.s32 0, %v582
      %v584 = vrot.slane %v579, %v583
      %v585 = vlaneseq
      %v586 = vshrl.u32 %v585, 7
      %v587 = vsub.s32 1, %v586
      %v588 = vrot.slane %v579, %v587
      %v623 = vunpack.c.l.b16 %v547
      %v624 = vunpack.c.h.b16 %v547
      %v625 = vunpack.c.l.b16 %v548
      %v626 = vunpack.c.h.b16 %v548
      %v627 = vunpack.c.l.b16 %v549
      %v628 = vunpack.c.h.b16 %v549
      %v629 = vunpack.c.l.b16 %v550
      %v630 = vunpack.c.h.b16 %v550
      %v631 = vunpack.c.l.b16 %v551
      %v632 = vunpack.c.h.b16 %v551
      %v633 = vunpack.c.l.b16 %v552
      %v634 = vunpack.c.h.b16 %v552
      %v635 = vunpack.c.l.b16 %v553
      %v636 = vunpack.c.h.b16 %v553
      %v637 = vunpack.c.l.b16 %v554
      %v638 = vunpack.c.h.b16 %v554
      %v639 = vunpack.c.l.b16 %v555
      %v640 = vunpack.c.h.b16 %v555
      %v641 = vunpack.c.l.b16 %v556
      %v642 = vunpack.c.h.b16 %v556
      %v643 = vunpack.c.l.b16 %v557
      %v644 = vunpack.c.h.b16 %v557
      %v645 = vunpack.c.l.b16 %v558
      %v646 = vunpack.c.h.b16 %v558
      %v647 = vunpack.c.l.b16 %v559
      %v648 = vunpack.c.h.b16 %v559
      %v649 = vunpack.c.l.b16 %v560
      %v650 = vunpack.c.h.b16 %v560
      %v651 = vunpack.c.l.b16 %v561
      %v652 = vunpack.c.h.b16 %v561
      %v653 = vunpack.c.l.b16 %v562
      %v654 = vunpack.c.h.b16 %v562
      %v655 = vunpack.c.l.b16 %v563
      %v656 = vunpack.c.h.b16 %v563
      %v657 = vunpack.c.l.b16 %v564
      %v658 = vunpack.c.h.b16 %v564
      %v659 = vunpack.c.l.b16 %v565
      %v660 = vunpack.c.h.b16 %v565
      %v661 = vunpack.c.l.b16 %v566
      %v662 = vunpack.c.h.b16 %v566
      %v663 = vunpack.c.l.b16 %v567
      %v664 = vunpack.c.h.b16 %v567
      %v665 = vunpack.c.l.b16 %v568
      %v666 = vunpack.c.h.b16 %v568
      %v667 = vunpack.c.l.b16 %v569
      %v668 = vunpack.c.h.b16 %v569
      %v669 = vunpack.c.l.b16 %v570
      %v670 = vunpack.c.h.b16 %v570
      %v671 = vunpack.c.l.b16 %v571
      %v672 = vunpack.c.h.b16 %v571
      %v673 = vunpack.c.l.b16 %v572
      %v674 = vunpack.c.h.b16 %v572
      %v675 = vunpack.c.l.b16 %v573
      %v676 = vunpack.c.h.b16 %v573
      %v677 = vunpack.c.l.b16 %v574
      %v678 = vunpack.c.h.b16 %v574
      %v679 = vunpack.c.l.b16 %v575
      %v680 = vunpack.c.h.b16 %v575
      %v681 = vunpack.c.l.b16 %v576
      %v682 = vunpack.c.h.b16 %v576
      %v683 = vunpack.c.l.b16 %v577
      %v684 = vunpack.c.h.b16 %v577
      %v685 = vunpack.c.l.b16 %v578
      %v686 = vunpack.c.h.b16 %v578
      %v687 = vpack.c.b16 %v625, %v623
      %v688 = vpack.c.b16 %v626, %v624
      %v689 = vpack.c.b16 %v629, %v627
      %v690 = vpack.c.b16 %v630, %v628
      %v691 = vpack.c.b16 %v633, %v631
      %v692 = vpack.c.b16 %v634, %v632
      %v693 = vpack.c.b16 %v637, %v635
      %v694 = vpack.c.b16 %v638, %v636
      %v695 = vpack.c.b16 %v641, %v639
      %v696 = vpack.c.b16 %v642, %v640
      %v697 = vpack.c.b16 %v645, %v643
      %v698 = vpack.c.b16 %v646, %v644
      %v699 = vpack.c.b16 %v649, %v647
      %v700 = vpack.c.b16 %v650, %v648
      %v701 = vpack.c.b16 %v653, %v651
      %v702 = vpack.c.b16 %v654, %v652
      %v703 = vpack.c.b16 %v657, %v655
      %v704 = vpack.c.b16 %v658, %v656
      %v705 = vpack.c.b16 %v661, %v659
      %v706 = vpack.c.b16 %v662, %v660
      %v707 = vpack.c.b16 %v665, %v663
      %v708 = vpack.c.b16 %v666, %v664
      %v709 = vpack.c.b16 %v669, %v667
      %v710 = vpack.c.b16 %v670, %v668
      %v711 = vpack.c.b16 %v673, %v671
      %v712 = vpack.c.b16 %v674, %v672
      %v713 = vpack.c.b16 %v677, %v675
      %v714 = vpack.c.b16 %v678, %v676
      %v715 = vpack.c.b16 %v681, %v679
      %v716 = vpack.c.b16 %v682, %v680
      %v717 = vpack.c.b16 %v685, %v683
      %v718 = vpack.c.b16 %v686, %v684
      %751 = vmatprep.subr.bf16.mxu0 %v688
      %752 = vmatpush1.bf16.msra.mxu0 %v687
      %753 = vmatprep.subr.bf16.mxu0 %v690
      %754 = vmatpush1.bf16.msra.mxu0 %v689
      %755 = vmatprep.subr.bf16.mxu0 %v692
      %756 = vmatpush1.bf16.msra.mxu0 %v691
      %757 = vmatprep.subr.bf16.mxu0 %v694
      %758 = vmatpush1.bf16.msra.mxu0 %v693
      %759 = vmatprep.subr.bf16.mxu0 %v696
      %760 = vmatpush1.bf16.msra.mxu0 %v695
      %761 = vmatprep.subr.bf16.mxu0 %v698
      %762 = vmatpush1.bf16.msra.mxu0 %v697
      %763 = vmatprep.subr.bf16.mxu0 %v700
      %764 = vmatpush1.bf16.msra.mxu0 %v699
      %765 = vmatprep.subr.bf16.mxu0 %v702
      %766 = vmatpush1.bf16.msra.mxu0 %v701
      %767 = vmatprep.subr.bf16.mxu0 %v704
      %768 = vmatpush1.bf16.msra.mxu0 %v703
      %769 = vmatprep.subr.bf16.mxu0 %v706
      %770 = vmatpush1.bf16.msra.mxu0 %v705
      %771 = vmatprep.subr.bf16.mxu0 %v708
      %772 = vmatpush1.bf16.msra.mxu0 %v707
      %773 = vmatprep.subr.bf16.mxu0 %v710
      %774 = vmatpush1.bf16.msra.mxu0 %v709
      %775 = vmatprep.subr.bf16.mxu0 %v712
      %776 = vmatpush1.bf16.msra.mxu0 %v711
      %777 = vmatprep.subr.bf16.mxu0 %v714
      %778 = vmatpush1.bf16.msra.mxu0 %v713
      %779 = vmatprep.subr.bf16.mxu0 %v716
      %780 = vmatpush1.bf16.msra.mxu0 %v715
      %781 = vmatprep.subr.bf16.mxu0 %v718
      %782 = vmatpush1.bf16.msra.mxu0 %v717
      %783 = vmatprep.mubr.bf16.mxu0 %v540
      %784 = vmatmul.mubr.bf16.gmra.mrb[0].mxu0 %v539
      %v785 = vpop.f32.mrb[0].mxu0
      %v786 = vadd.f32 %v584, %v785
      %v787 = vpop.f32.mrb[0].mxu0
      %v788 = vadd.f32 %v588, %v787
      %v789 = vpop.f32.mrb[0].mxu0
      %v790 = vadd.f32 %v584, %v789
      %v791 = vpop.f32.mrb[0].mxu0
      %v792 = vadd.f32 %v588, %v791
      %793 = vmatprep.mubr.bf16.mxu0 %v542
      %794 = vmatmul.mubr.bf16.gmra.mrb[0].mxu0 %v541
      %v795 = vpop.f32.mrb[0].mxu0
      %v796 = vadd.f32 %v584, %v795
      %v797 = vpop.f32.mrb[0].mxu0
      %v798 = vadd.f32 %v588, %v797
      %v799 = vpop.f32.mrb[0].mxu0
      %v800 = vadd.f32 %v584, %v799
      %v801 = vpop.f32.mrb[0].mxu0
      %v802 = vadd.f32 %v588, %v801
      %803 = vmatprep.mubr.bf16.mxu0 %v544
      %804 = vmatmul.mubr.bf16.gmra.mrb[0].mxu0 %v543
      %v805 = vpop.f32.mrb[0].mxu0
      %v806 = vadd.f32 %v584, %v805
      %v807 = vpop.f32.mrb[0].mxu0
      %v808 = vadd.f32 %v588, %v807
      %v809 = vpop.f32.mrb[0].mxu0
      %v810 = vadd.f32 %v584, %v809
      %v811 = vpop.f32.mrb[0].mxu0
      %v812 = vadd.f32 %v588, %v811
      %813 = vmatprep.mubr.bf16.mxu0 %v546
      %814 = vmatmul.mubr.bf16.gmra.mrb[0].mxu0 %v545
      %v815 = vpop.f32.mrb[0].mxu0
      %v816 = vadd.f32 %v584, %v815
      %v817 = vpop.f32.mrb[0].mxu0
      %v818 = vadd.f32 %v588, %v817
      %v819 = vpop.f32.mrb[0].mxu0
      %v820 = vadd.f32 %v584, %v819
      %v821 = vpop.f32.mrb[0].mxu0
      %v822 = vadd.f32 %v588, %v821
      %823 = vdwg.mxu0
      %v824 = vmax.f32 %v786, 0.0
      %v825 = vmax.f32 %v788, 0.0
      %v826 = vmax.f32 %v790, 0.0
      %v827 = vmax.f32 %v792, 0.0
      %v828 = vmax.f32 %v796, 0.0
      %v829 = vmax.f32 %v798, 0.0
      %v830 = vmax.f32 %v800, 0.0
      %v831 = vmax.f32 %v802, 0.0
      %v832 = vmax.f32 %v806, 0.0
      %v833 = vmax.f32 %v808, 0.0
      %v834 = vmax.f32 %v810, 0.0
      %v835 = vmax.f32 %v812, 0.0
      %v836 = vmax.f32 %v816, 0.0
      %v837 = vmax.f32 %v818, 0.0
      %v838 = vmax.f32 %v820, 0.0
      %v839 = vmax.f32 %v822, 0.0
      %v840 = vld [vmem:[%s4] sm:$0x3]
      %v842 = vlaneseq
      %v843 = vshrl.u32 %v842, 7
      %v844 = vsub.s32 0, %v843
      %v845 = vrot.slane %v840, %v844
      %v846 = vlaneseq
      %v847 = vshrl.u32 %v846, 7
      %v848 = vsub.s32 1, %v847
      %v849 = vrot.slane %v840, %v848
      %v852 = vmul.f32 %v824, %v845
      %v853 = vmul.f32 %v825, %v849
      %v854 = vmul.f32 %v826, %v845
      %v855 = vmul.f32 %v827, %v849
      %v856 = vmul.f32 %v828, %v845
      %v857 = vmul.f32 %v829, %v849
      %v858 = vmul.f32 %v830, %v845
      %v859 = vmul.f32 %v831, %v849
      %v860 = vmul.f32 %v832, %v845
      %v861 = vmul.f32 %v833, %v849
      %v862 = vmul.f32 %v834, %v845
      %v863 = vmul.f32 %v835, %v849
      %v864 = vmul.f32 %v836, %v845
      %v865 = vmul.f32 %v837, %v849
      %v866 = vmul.f32 %v838, %v845
      %v867 = vmul.f32 %v839, %v849
      %v868 = vadd.f32 %v852, %v853
      %869 = vadd.xlane.f32.xlu0 %v868
      %v870 = vpop.xlane.xlu0 %869
      %v871 = vadd.f32 %v854, %v855
      %872 = vadd.xlane.f32.xlu0 %v871
      %v873 = vpop.xlane.xlu0 %872
      %v874 = vadd.f32 %v856, %v857
      %875 = vadd.xlane.f32.xlu0 %v874
      %v876 = vpop.xlane.xlu0 %875
      %v877 = vadd.f32 %v858, %v859
      %878 = vadd.xlane.f32.xlu0 %v877
      %v879 = vpop.xlane.xlu0 %878
      %v880 = vadd.f32 %v860, %v861
      %881 = vadd.xlane.f32.xlu0 %v880
      %v882 = vpop.xlane.xlu0 %881
      %v883 = vadd.f32 %v862, %v863
      %884 = vadd.xlane.f32.xlu0 %v883
      %v885 = vpop.xlane.xlu0 %884
      %v886 = vadd.f32 %v864, %v865
      %887 = vadd.xlane.f32.xlu0 %v886
      %v888 = vpop.xlane.xlu0 %887
      %v889 = vadd.f32 %v866, %v867
      %890 = vadd.xlane.f32.xlu0 %v889
      %v891 = vpop.xlane.xlu0 %890
      %v892 = vld [vmem:[%s5] sm:$0x3]
      %v894 = vlaneseq
      %v895 = vshrl.u32 %v894, 7
      %v896 = vsub.s32 0, %v895
      %v897 = vrot.slane %v892, %v896
      %v898 = vlaneseq
      %v899 = vshrl.u32 %v898, 7
      %v900 = vsub.s32 1, %v899
      %v901 = vrot.slane %v892, %v900
      %v904 = vmul.f32 %v523, %v897
      %v905 = vmul.f32 %v524, %v901
      %v906 = vmul.f32 %v525, %v897
      %v907 = vmul.f32 %v526, %v901
      %v908 = vmul.f32 %v527, %v897
      %v909 = vmul.f32 %v528, %v901
      %v910 = vmul.f32 %v529, %v897
      %v911 = vmul.f32 %v530, %v901
      %v912 = vmul.f32 %v531, %v897
      %v913 = vmul.f32 %v532, %v901
      %v914 = vmul.f32 %v533, %v897
      %v915 = vmul.f32 %v534, %v901
      %v916 = vmul.f32 %v535, %v897
      %v917 = vmul.f32 %v536, %v901
      %v918 = vmul.f32 %v537, %v897
      %v919 = vmul.f32 %v538, %v901
      %v920 = vadd.f32 %v904, %v905
      %921 = vadd.xlane.f32.xlu0 %v920
      %v922 = vpop.xlane.xlu0 %921
      %v923 = vadd.f32 %v906, %v907
      %924 = vadd.xlane.f32.xlu0 %v923
      %v925 = vpop.xlane.xlu0 %924
      %v926 = vadd.f32 %v908, %v909
      %927 = vadd.xlane.f32.xlu0 %v926
      %v928 = vpop.xlane.xlu0 %927
      %v929 = vadd.f32 %v910, %v911
      %930 = vadd.xlane.f32.xlu0 %v929
      %v931 = vpop.xlane.xlu0 %930
      %v932 = vadd.f32 %v912, %v913
      %933 = vadd.xlane.f32.xlu0 %v932
      %v934 = vpop.xlane.xlu0 %933
      %v935 = vadd.f32 %v914, %v915
      %936 = vadd.xlane.f32.xlu0 %v935
      %v937 = vpop.xlane.xlu0 %936
      %v938 = vadd.f32 %v916, %v917
      %939 = vadd.xlane.f32.xlu0 %v938
      %v940 = vpop.xlane.xlu0 %939
      %v941 = vadd.f32 %v918, %v919
      %942 = vadd.xlane.f32.xlu0 %v941
      %v943 = vpop.xlane.xlu0 %942
      %v944 = vadd.f32 %v870, %v922
      %v945 = vadd.f32 %v873, %v925
      %v946 = vadd.f32 %v876, %v928
      %v947 = vadd.f32 %v879, %v931
      %v948 = vadd.f32 %v882, %v934
      %v949 = vadd.f32 %v885, %v937
      %v950 = vadd.f32 %v888, %v940
      %v951 = vadd.f32 %v891, %v943
      %s952 = sld [smem:[#allocation2]]
      %v953 = vstv %s952
      %v954 = vadd.f32 %v944, %v953
      %v955 = vadd.f32 %v945, %v953
      %v956 = vadd.f32 %v946, %v953
      %v957 = vadd.f32 %v947, %v953
      %v958 = vadd.f32 %v948, %v953
      %v959 = vadd.f32 %v949, %v953
      %v960 = vadd.f32 %v950, %v953
      %v961 = vadd.f32 %v951, %v953
      %v962 = vmax.f32 %v954, 0.0
      %v963 = vmax.f32 %v955, 0.0
      %v964 = vmax.f32 %v956, 0.0
      %v965 = vmax.f32 %v957, 0.0
      %v966 = vmax.f32 %v958, 0.0
      %v967 = vmax.f32 %v959, 0.0
      %v968 = vmax.f32 %v960, 0.0
      %v969 = vmax.f32 %v961, 0.0
      %v970 = vand.u32 2147483647, %v954
      %v971 = vand.u32 2147483647, %v955
      %v972 = vand.u32 2147483647, %v956
      %v973 = vand.u32 2147483647, %v957
      %v974 = vand.u32 2147483647, %v958
      %v975 = vand.u32 2147483647, %v959
      %v976 = vand.u32 2147483647, %v960
      %v977 = vand.u32 2147483647, %v961
      %v978 = vsub.f32 0.0, %v970
      %v979 = vsub.f32 0.0, %v971
      %v980 = vsub.f32 0.0, %v972
      %v981 = vsub.f32 0.0, %v973
      %v982 = vsub.f32 0.0, %v974
      %v983 = vsub.f32 0.0, %v975
      %v984 = vsub.f32 0.0, %v976
      %v985 = vsub.f32 0.0, %v977
      %v986 = vmul.f32 %v978, 1.442695
      %v987 = vpow.pop %v986
      %v988 = vmul.f32 %v979, 1.442695
      %v989 = vpow.pop %v988
      %v990 = vmul.f32 %v980, 1.442695
      %v991 = vpow.pop %v990
      %v992 = vmul.f32 %v981, 1.442695
      %v993 = vpow.pop %v992
      %v994 = vmul.f32 %v982, 1.442695
      %v995 = vpow.pop %v994
      %v996 = vmul.f32 %v983, 1.442695
      %v997 = vpow.pop %v996
      %v998 = vmul.f32 %v984, 1.442695
      %v999 = vpow.pop %v998
      %v1000 = vmul.f32 %v985, 1.442695
      %v1001 = vpow.pop %v1000
      %v1002 = vadd.f32 %v987, 1.0
      %v1003 = vlog2.pop %v1002
      %v1004 = vmul.f32 %v1003, 0.6931472
      %v1005 = vmul.f32 -0.5, %v987
      %v1006 = vadd.f32 %v1005, 1.0
      %v1007 = vmul.f32 %v1006, %v987
      %v1008 = vand.u32 2147483647, %v987
      %vm1009 = vcmp.lt.f32.partialorder %v1008, 0.0004427343
      %v1010 = vsel %vm1009, %v1007, %v1004
      %v1011 = vadd.f32 %v989, 1.0
      %v1012 = vlog2.pop %v1011
      %v1013 = vmul.f32 %v1012, 0.6931472
      %v1014 = vmul.f32 -0.5, %v989
      %v1015 = vadd.f32 %v1014, 1.0
      %v1016 = vmul.f32 %v1015, %v989
      %v1017 = vand.u32 2147483647, %v989
      %vm1018 = vcmp.lt.f32.partialorder %v1017, 0.0004427343
      %v1019 = vsel %vm1018, %v1016, %v1013
      %v1020 = vadd.f32 %v991, 1.0
      %v1021 = vlog2.pop %v1020
      %v1022 = vmul.f32 %v1021, 0.6931472
      %v1023 = vmul.f32 -0.5, %v991
      %v1024 = vadd.f32 %v1023, 1.0
      %v1025 = vmul.f32 %v1024, %v991
      %v1026 = vand.u32 2147483647, %v991
      %vm1027 = vcmp.lt.f32.partialorder %v1026, 0.0004427343
      %v1028 = vsel %vm1027, %v1025, %v1022
      %v1029 = vadd.f32 %v993, 1.0
      %v1030 = vlog2.pop %v1029
      %v1031 = vmul.f32 %v1030, 0.6931472
      %v1032 = vmul.f32 -0.5, %v993
      %v1033 = vadd.f32 %v1032, 1.0
      %v1034 = vmul.f32 %v1033, %v993
      %v1035 = vand.u32 2147483647, %v993
      %vm1036 = vcmp.lt.f32.partialorder %v1035, 0.0004427343
      %v1037 = vsel %vm1036, %v1034, %v1031
      %v1038 = vadd.f32 %v995, 1.0
      %v1039 = vlog2.pop %v1038
      %v1040 = vmul.f32 %v1039, 0.6931472
      %v1041 = vmul.f32 -0.5, %v995
      %v1042 = vadd.f32 %v1041, 1.0
      %v1043 = vmul.f32 %v1042, %v995
      %v1044 = vand.u32 2147483647, %v995
      %vm1045 = vcmp.lt.f32.partialorder %v1044, 0.0004427343
      %v1046 = vsel %vm1045, %v1043, %v1040
      %v1047 = vadd.f32 %v997, 1.0
      %v1048 = vlog2.pop %v1047
      %v1049 = vmul.f32 %v1048, 0.6931472
      %v1050 = vmul.f32 -0.5, %v997
      %v1051 = vadd.f32 %v1050, 1.0
      %v1052 = vmul.f32 %v1051, %v997
      %v1053 = vand.u32 2147483647, %v997
      %vm1054 = vcmp.lt.f32.partialorder %v1053, 0.0004427343
      %v1055 = vsel %vm1054, %v1052, %v1049
      %v1056 = vadd.f32 %v999, 1.0
      %v1057 = vlog2.pop %v1056
      %v1058 = vmul.f32 %v1057, 0.6931472
      %v1059 = vmul.f32 -0.5, %v999
      %v1060 = vadd.f32 %v1059, 1.0
      %v1061 = vmul.f32 %v1060, %v999
      %v1062 = vand.u32 2147483647, %v999
      %vm1063 = vcmp.lt.f32.partialorder %v1062, 0.0004427343
      %v1064 = vsel %vm1063, %v1061, %v1058
      %v1065 = vadd.f32 %v1001, 1.0
      %v1066 = vlog2.pop %v1065
      %v1067 = vmul.f32 %v1066, 0.6931472
      %v1068 = vmul.f32 -0.5, %v1001
      %v1069 = vadd.f32 %v1068, 1.0
      %v1070 = vmul.f32 %v1069, %v1001
      %v1071 = vand.u32 2147483647, %v1001
      %vm1072 = vcmp.lt.f32.partialorder %v1071, 0.0004427343
      %v1073 = vsel %vm1072, %v1070, %v1067
      %v1074 = vadd.f32 %v962, %v1010
      %v1075 = vadd.f32 %v963, %v1019
      %v1076 = vadd.f32 %v964, %v1028
      %v1077 = vadd.f32 %v965, %v1037
      %v1078 = vadd.f32 %v966, %v1046
      %v1079 = vadd.f32 %v967, %v1055
      %v1080 = vadd.f32 %v968, %v1064
      %v1081 = vadd.f32 %v969, %v1073
      %v1082 = vmul.f32 %v523, %v1074
      %v1083 = vmul.f32 %v524, %v1074
      %v1084 = vmul.f32 %v525, %v1075
      %v1085 = vmul.f32 %v526, %v1075
      %v1086 = vmul.f32 %v527, %v1076
      %v1087 = vmul.f32 %v528, %v1076
      %v1088 = vmul.f32 %v529, %v1077
      %v1089 = vmul.f32 %v530, %v1077
      %v1090 = vmul.f32 %v531, %v1078
      %v1091 = vmul.f32 %v532, %v1078
      %v1092 = vmul.f32 %v533, %v1079
      %v1093 = vmul.f32 %v534, %v1079
      %v1094 = vmul.f32 %v535, %v1080
      %v1095 = vmul.f32 %v536, %v1080
      %v1096 = vmul.f32 %v537, %v1081
      %v1097 = vmul.f32 %v538, %v1081
      %v1098 = vmax.f32 %v1082, 0.0
      %v1099 = vmax.f32 %v1083, 0.0
      %v1100 = vmax.f32 %v1084, 0.0
      %v1101 = vmax.f32 %v1085, 0.0
      %v1102 = vmax.f32 %v1086, 0.0
      %v1103 = vmax.f32 %v1087, 0.0
      %v1104 = vmax.f32 %v1088, 0.0
      %v1105 = vmax.f32 %v1089, 0.0
      %v1106 = vmax.f32 %v1090, 0.0
      %v1107 = vmax.f32 %v1091, 0.0
      %v1108 = vmax.f32 %v1092, 0.0
      %v1109 = vmax.f32 %v1093, 0.0
      %v1110 = vmax.f32 %v1094, 0.0
      %v1111 = vmax.f32 %v1095, 0.0
      %v1112 = vmax.f32 %v1096, 0.0
      %v1113 = vmax.f32 %v1097, 0.0
      %v1114 = vpack.c.bf16 %v1100, %v1098
      %v1115 = vpack.c.bf16 %v1101, %v1099
      %v1116 = vpack.c.bf16 %v1104, %v1102
      %v1117 = vpack.c.bf16 %v1105, %v1103
      %v1118 = vpack.c.bf16 %v1108, %v1106
      %v1119 = vpack.c.bf16 %v1109, %v1107
      %v1120 = vpack.c.bf16 %v1112, %v1110
      %v1121 = vpack.c.bf16 %v1113, %v1111
      %v1130 = vunpack.c.l.b16 %v1114
      %v1131 = vunpack.c.l.b16 %v1115
      %v1132 = vunpack.c.h.b16 %v1114
      %v1133 = vunpack.c.h.b16 %v1115
      %v1134 = vunpack.c.l.b16 %v1116
      %v1135 = vunpack.c.l.b16 %v1117
      %v1136 = vunpack.c.h.b16 %v1116
      %v1137 = vunpack.c.h.b16 %v1117
      %v1138 = vunpack.c.l.b16 %v1118
      %v1139 = vunpack.c.l.b16 %v1119
      %v1140 = vunpack.c.h.b16 %v1118
      %v1141 = vunpack.c.h.b16 %v1119
      %v1142 = vunpack.c.l.b16 %v1120
      %v1143 = vunpack.c.l.b16 %v1121
      %v1144 = vunpack.c.h.b16 %v1120
      %v1145 = vunpack.c.h.b16 %v1121
      %v1146 = vpack.c.b16 %v1131, %v1130
      %v1147 = vpack.c.b16 %v1133, %v1132
      %v1148 = vpack.c.b16 %v1135, %v1134
      %v1149 = vpack.c.b16 %v1137, %v1136
      %v1150 = vpack.c.b16 %v1139, %v1138
      %v1151 = vpack.c.b16 %v1141, %v1140
      %v1152 = vpack.c.b16 %v1143, %v1142
      %v1153 = vpack.c.b16 %v1145, %v1144
      %1162 = vst [vmem:[%s360] sm:$0xff] %v1146
      %1163 = vst [vmem:[%s360 + $0x8] sm:$0xff] %v1147
      %1164 = vst [vmem:[%s360 + $0x10] sm:$0xff] %v1148
      %1165 = vst [vmem:[%s360 + $0x18] sm:$0xff] %v1149
      %1166 = vst [vmem:[%s360 + $0x20] sm:$0xff] %v1150
      %1167 = vst [vmem:[%s360 + $0x28] sm:$0xff] %v1151
      %1168 = vst [vmem:[%s360 + $0x30] sm:$0xff] %v1152
      %1169 = vst [vmem:[%s360 + $0x38] sm:$0xff] %v1153
      %vm1170 = vcmask 7168
      %1171 = vst.msk [vmem:[%s370] sm:$0xff] %vm1170, %v1074
      %1172 = vst.msk [vmem:[%s370 + $0x8] sm:$0xff] %vm1170, %v1075
      %1173 = vst.msk [vmem:[%s370 + $0x10] sm:$0xff] %vm1170, %v1076
      %1174 = vst.msk [vmem:[%s370 + $0x18] sm:$0xff] %vm1170, %v1077
      %1175 = vst.msk [vmem:[%s370 + $0x20] sm:$0xff] %vm1170, %v1078
      %1176 = vst.msk [vmem:[%s370 + $0x28] sm:$0xff] %vm1170, %v1079
      %1177 = vst.msk [vmem:[%s370 + $0x30] sm:$0xff] %vm1170, %v1080
      %1178 = vst.msk [vmem:[%s370 + $0x38] sm:$0xff] %vm1170, %v1081
      %s1179 = smul.u32 8, %s26
      %p1180 = scmp.lt.s32.totalorder %s25, 1
      %s1181 = scalar_select %p1180, %s25, 1
      %p1182 = scmp.lt.s32.totalorder %s1179, 7
      %s1183 = scalar_select %p1182, %s1179, 7
      %s1184 = smul.addr %s1183, 2
      %s1185 = smul.addr %s1181, 16
      %s1186 = sadd.s32 %s1184, %s1185
      %s1187 = smul.addr %s1186, 4
      %s1188 = scalar_lea.vmem %s7, %s1187
      %s1189 = smul.u32 8, %s26
      %p1190 = scmp.lt.s32.totalorder %s25, 1
      %s1191 = scalar_select %p1190, %s25, 1
      %p1192 = scmp.lt.s32.totalorder %s1189, 7
      %s1193 = scalar_select %p1192, %s1189, 7
      %s1194 = smul.addr %s1191, 8
      %s1195 = sadd.s32 %s1193, %s1194
      %s1196 = smul.addr %s1195, 8
      %s1197 = scalar_lea.vmem %s8, %s1196
      // Predicated region
      $region49: #{attn_graph_forward.2} parent=47 // pred_check
        %p1198 = pneg %p207
      $region50: #{attn_graph_forward.2} parent=47 // pred_check_branch
        %1200 = sbr.rel (%p1198) target = $region52
      $region51: #{attn_graph_forward.2} parent=47 // pred_region
        %s1201 = smul.u32 8, %s26
      $region52: #{attn_graph_forward.2} parent=47 // pred_fallthru
        _
      // Predicated region
      $region53: #{attn_graph_forward.2} parent=47 // pred_check
        %p1202 = pneg %p235
      $region54: #{attn_graph_forward.2} parent=47 // pred_check_branch
        %1204 = sbr.rel (%p1202) target = $region56
      $region55: #{attn_graph_forward.2} parent=47 // pred_region
        %s1205 = smul.u32 8, %s26
      $region56: #{attn_graph_forward.2} parent=47 // pred_fallthru
        _
    $region48: #{attn_graph_forward.2} parent=5 // pred_fallthru
      _
    %p1206 = scmp.le.s32.totalorder 2, %s16
    // Predicated region
    $region57: #{attn_graph_forward.2} parent=5 // pred_check
      %p1207 = pneg %p1206
    $region58: #{attn_graph_forward.2} parent=5 // pred_check_branch
      %1209 = sbr.rel (%p1207) target = $region60
    $region59: #{attn_graph_forward.2} parent=5 // pred_region
      %s1210 = ssub.s32 %s16, 2
      // Predicated region
      $region61: #{attn_graph_forward.2} parent=59 // pred_check
        %p1211 = pneg %p213
      $region62: #{attn_graph_forward.2} parent=59 // pred_check_branch
        %1213 = sbr.rel (%p1211) target = $region64
      $region63: #{attn_graph_forward.2} parent=59 // pred_region
        %s1214 = smul.u32 8, %s28
        %p1215 = scmp.lt.s32.totalorder %s27, 1
        %s1216 = scalar_select %p1215, %s27, 1
        %p1217 = scmp.lt.s32.totalorder %s1214, 7
        %s1218 = scalar_select %p1217, %s1214, 7
        %s1219 = smul.addr %s1218, 2
        %s1220 = smul.addr %s1216, 16
        %s1221 = sadd.s32 %s1219, %s1220
        %s1222 = smul.addr %s1221, 4
        %s1223 = scalar_lea.vmem %s7, %s1222
      $region64: #{attn_graph_forward.2} parent=59 // pred_fallthru
        _
      // Predicated region
      $region65: #{attn_graph_forward.2} parent=59 // pred_check
        %p1224 = pneg %p241
      $region66: #{attn_graph_forward.2} parent=59 // pred_check_branch
        %1226 = sbr.rel (%p1224) target = $region68
      $region67: #{attn_graph_forward.2} parent=59 // pred_region
        %s1227 = smul.u32 8, %s28
        %p1228 = scmp.lt.s32.totalorder %s27, 1
        %s1229 = scalar_select %p1228, %s27, 1
        %p1230 = scmp.lt.s32.totalorder %s1227, 7
        %s1231 = scalar_select %p1230, %s1227, 7
        %s1232 = smul.addr %s1229, 8
        %s1233 = sadd.s32 %s1231, %s1232
        %s1234 = smul.addr %s1233, 8
        %s1235 = scalar_lea.vmem %s8, %s1234
      $region68: #{attn_graph_forward.2} parent=59 // pred_fallthru
        _
    $region60: #{attn_graph_forward.2} parent=5 // pred_fallthru
      _
  $region6: #{attn_graph_forward.2} parent=0 // loop_footer
    %s20 = sadd.s32 1, %s16
  $region7: #{attn_graph_forward.2} parent=0 // loop_footer_branch
    %15 = sbr.rel target = $region3
  $region8: #{attn_graph_forward.2} parent=0 // loop_exit
    _

// kernel: attn_graph_forward.3
$region0: #{attn_graph_forward.3}
  #allocation0 [shape = 'u32[]', space=smem, size = 0x4, offset = 0x4, fixed_abs, tag = 'smem constant byte address 0x4 - core index']
  #allocation1 [shape = 'u32[144,128]{1,0:T(1,128)}', space=vmem, size = 0x12000, scoped, tag = 'internal scratch']
  %s0 = inlined_call_operand.vmem [shape: bf16[2,16,256], index: 0, kind: input, shape index: {}]
  %s1 = inlined_call_operand.vmem [shape: f32[2,16,16], index: 1, kind: input, shape index: {}]
  %s2 = inlined_call_operand.vmem [shape: bf16[256,256], index: 2, kind: input, shape index: {}]
  %s3 = inlined_call_operand.vmem [shape: bf16[256,128], index: 3, kind: input, shape index: {}]
  %s4 = inlined_call_operand.vmem [shape: bf16[128,128], index: 4, kind: input, shape index: {}]
  %s5 = inlined_call_operand.vmem [shape: bf16[128,64], index: 5, kind: input, shape index: {}]
  %s6 = inlined_call_operand.vmem [shape: bf16[64,32], index: 6, kind: input, shape index: {}]
  %s7 = inlined_call_operand.vmem [shape: f32[1,32], index: 7, kind: input, shape index: {}]
  %s8 = inlined_call_operand.vmem [shape: bf16[32,10], index: 8, kind: input, shape index: {}]
  %s9 = inlined_call_operand.vmem [shape: f32[1,10], index: 9, kind: input, shape index: {}]
  %s10 = inlined_call_operand.hbm [shape: f32[2,10], index: 10, kind: output, shape index: {}]
  %s11 = sld [smem:[#allocation0]]
  $region50: #{attn_graph_forward.3} parent=0
    _
  %s13 = ssub.s32 1, %s11
  %s14 = scalar_select 0, %s13, %s11
  $region1: #{attn_graph_forward.3} parent=0
    #allocation2 [shape = 'u8[1024]{0}', space=vmem, size = 0x400, scoped, tag = 'output window, operand 0, single buffered']
    #allocation3 [shape = 's32[1]{0}', space=sflag, size = 0x4, scoped, tag = 'scoped memory for attn_graph_forward.3']
    %15 = vsyncpa [#allocation3], 0
    // Predicated region
    $region2: #{attn_graph_forward.3} parent=1 // pred_check
      _
    $region3: #{attn_graph_forward.3} parent=1 // pred_check_branch
      %17 = sbr.rel (0) target = $region5
    $region4: #{attn_graph_forward.3} parent=1 // pred_region
      _
    $region5: #{attn_graph_forward.3} parent=1 // pred_fallthru
      _
    // Predicated region
    $region6: #{attn_graph_forward.3} parent=1 // pred_check
      _
    $region7: #{attn_graph_forward.3} parent=1 // pred_check_branch
      %19 = sbr.rel (0) target = $region9
    $region8: #{attn_graph_forward.3} parent=1 // pred_region
      _
    $region9: #{attn_graph_forward.3} parent=1 // pred_fallthru
      _
    // Predicated region
    $region10: #{attn_graph_forward.3} parent=1 // pred_check
      _
    $region11: #{attn_graph_forward.3} parent=1 // pred_check_branch
      %21 = sbr.rel (0) target = $region13
    $region12: #{attn_graph_forward.3} parent=1 // pred_region
      _
    $region13: #{attn_graph_forward.3} parent=1 // pred_fallthru
      _
    // Predicated region
    $region14: #{attn_graph_forward.3} parent=1 // pred_check
      _
    $region15: #{attn_graph_forward.3} parent=1 // pred_check_branch
      %23 = sbr.rel (0) target = $region17
    $region16: #{attn_graph_forward.3} parent=1 // pred_region
      _
    $region17: #{attn_graph_forward.3} parent=1 // pred_fallthru
      _
    // Predicated region
    $region18: #{attn_graph_forward.3} parent=1 // pred_check
      _
    $region19: #{attn_graph_forward.3} parent=1 // pred_check_branch
      %25 = sbr.rel (0) target = $region21
    $region20: #{attn_graph_forward.3} parent=1 // pred_region
      _
    $region21: #{attn_graph_forward.3} parent=1 // pred_fallthru
      _
    // Predicated region
    $region22: #{attn_graph_forward.3} parent=1 // pred_check
      _
    $region23: #{attn_graph_forward.3} parent=1 // pred_check_branch
      %27 = sbr.rel (0) target = $region25
    $region24: #{attn_graph_forward.3} parent=1 // pred_region
      _
    $region25: #{attn_graph_forward.3} parent=1 // pred_fallthru
      _
    // Predicated region
    $region26: #{attn_graph_forward.3} parent=1 // pred_check
      _
    $region27: #{attn_graph_forward.3} parent=1 // pred_check_branch
      %29 = sbr.rel (0) target = $region29
    $region28: #{attn_graph_forward.3} parent=1 // pred_region
      _
    $region29: #{attn_graph_forward.3} parent=1 // pred_fallthru
      _
    // Predicated region
    $region30: #{attn_graph_forward.3} parent=1 // pred_check
      _
    $region31: #{attn_graph_forward.3} parent=1 // pred_check_branch
      %31 = sbr.rel (0) target = $region33
    $region32: #{attn_graph_forward.3} parent=1 // pred_region
      _
    $region33: #{attn_graph_forward.3} parent=1 // pred_fallthru
      _
    // Predicated region
    $region34: #{attn_graph_forward.3} parent=1 // pred_check
      _
    $region35: #{attn_graph_forward.3} parent=1 // pred_check_branch
      %33 = sbr.rel (0) target = $region37
    $region36: #{attn_graph_forward.3} parent=1 // pred_region
      _
    $region37: #{attn_graph_forward.3} parent=1 // pred_fallthru
      _
    // Predicated region
    $region38: #{attn_graph_forward.3} parent=1 // pred_check
      _
    $region39: #{attn_graph_forward.3} parent=1 // pred_check_branch
      %35 = sbr.rel (0) target = $region41
    $region40: #{attn_graph_forward.3} parent=1 // pred_region
      _
    $region41: #{attn_graph_forward.3} parent=1 // pred_fallthru
      _
    %v37 = vld [vmem:[%s1] sm:$0xff]
    %v38 = vld [vmem:[%s1 + $0x8] sm:$0xff]
    %v39 = vld [vmem:[%s1 + $0x10] sm:$0xff]
    %v40 = vld [vmem:[%s1 + $0x18] sm:$0xff]
    %vm41 = vcmask 130048
    %v42 = vsel %vm41, %v37, 0.0
    %43 = vadd.xlane.f32.xlu0 %v42
    %v44 = vpop.xlane.xlu0 %43
    %v45 = vsel %vm41, %v38, 0.0
    %46 = vadd.xlane.f32.xlu0 %v45
    %v47 = vpop.xlane.xlu0 %46
    %v48 = vsel %vm41, %v39, 0.0
    %49 = vadd.xlane.f32.xlu0 %v48
    %v50 = vpop.xlane.xlu0 %49
    %v51 = vsel %vm41, %v40, 0.0
    %52 = vadd.xlane.f32.xlu0 %v51
    %v53 = vpop.xlane.xlu0 %52
    %v54 = vrsqrt.pop %v44
    %v55 = vrsqrt.pop %v47
    %v56 = vrsqrt.pop %v50
    %v57 = vrsqrt.pop %v53
    %v58 = vmul.f32 %v54, %v37
    %v59 = vmul.f32 %v55, %v38
    %v60 = vmul.f32 %v56, %v39
    %v61 = vmul.f32 %v57, %v40
    %62 = vxpose.xlu0.b32.start [1/16] %v54, 128
    %63 = vxpose.xlu0.b32.cont [2/16] %v55, 128
    %64 = vxpose.xlu0.b32.cont [3/16] 0.0, 128
    %65 = vxpose.xlu0.b32.cont [4/16] 0.0, 128
    %66 = vxpose.xlu0.b32.cont [5/16] 0.0, 128
    %67 = vxpose.xlu0.b32.cont [6/16] 0.0, 128
    %68 = vxpose.xlu0.b32.cont [7/16] 0.0, 128
    %69 = vxpose.xlu0.b32.cont [8/16] 0.0, 128
    %70 = vxpose.xlu0.b32.cont [9/16] 0.0, 128
    %71 = vxpose.xlu0.b32.cont [10/16] 0.0, 128
    %72 = vxpose.xlu0.b32.cont [11/16] 0.0, 128
    %73 = vxpose.xlu0.b32.cont [12/16] 0.0, 128
    %74 = vxpose.xlu0.b32.cont [13/16] 0.0, 128
    %75 = vxpose.xlu0.b32.cont [14/16] 0.0, 128
    %76 = vxpose.xlu0.b32.cont [15/16] 0.0, 128
    %77 = vxpose.xlu0.b32.end [16/16] 0.0, 128
    %v78 = vpop.trf.xlu0
    %v79 = vpop.trf.xlu0
    %v80 = vpop.trf.xlu0
    %v81 = vpop.trf.xlu0
    %v82 = vpop.trf.xlu0
    %v83 = vpop.trf.xlu0
    %v84 = vpop.trf.xlu0
    %v85 = vpop.trf.xlu0
    %v86 = vpop.trf.xlu0
    %v87 = vpop.trf.xlu0
    %v88 = vpop.trf.xlu0
    %v89 = vpop.trf.xlu0
    %v90 = vpop.trf.xlu0
    %v91 = vpop.trf.xlu0
    %v92 = vpop.trf.xlu0
    %v93 = vpop.trf.xlu0
    %94 = vxpose.xlu0.b32.start [1/16] %v56, 128
    %95 = vxpose.xlu0.b32.cont [2/16] %v57, 128
    %96 = vxpose.xlu0.b32.cont [3/16] 0.0, 128
    %97 = vxpose.xlu0.b32.cont [4/16] 0.0, 128
    %98 = vxpose.xlu0.b32.cont [5/16] 0.0, 128
    %99 = vxpose.xlu0.b32.cont [6/16] 0.0, 128
    %100 = vxpose.xlu0.b32.cont [7/16] 0.0, 128
    %101 = vxpose.xlu0.b32.cont [8/16] 0.0, 128
    %102 = vxpose.xlu0.b32.cont [9/16] 0.0, 128
    %103 = vxpose.xlu0.b32.cont [10/16] 0.0, 128
    %104 = vxpose.xlu0.b32.cont [11/16] 0.0, 128
    %105 = vxpose.xlu0.b32.cont [12/16] 0.0, 128
    %106 = vxpose.xlu0.b32.cont [13/16] 0.0, 128
    %107 = vxpose.xlu0.b32.cont [14/16] 0.0, 128
    %108 = vxpose.xlu0.b32.cont [15/16] 0.0, 128
    %109 = vxpose.xlu0.b32.end [16/16] 0.0, 128
    %v110 = vpop.trf.xlu0
    %v111 = vpop.trf.xlu0
    %v112 = vpop.trf.xlu0
    %v113 = vpop.trf.xlu0
    %v114 = vpop.trf.xlu0
    %v115 = vpop.trf.xlu0
    %v116 = vpop.trf.xlu0
    %v117 = vpop.trf.xlu0
    %v118 = vpop.trf.xlu0
    %v119 = vpop.trf.xlu0
    %v120 = vpop.trf.xlu0
    %v121 = vpop.trf.xlu0
    %v122 = vpop.trf.xlu0
    %v123 = vpop.trf.xlu0
    %v124 = vpop.trf.xlu0
    %v125 = vpop.trf.xlu0
    %v126 = vlaneseq
    %v127 = vshrl.u32 %v126, 7
    %v128 = vsub.s32 0, %v127
    %v129 = vrot.slane %v78, %v128
    %v130 = vlaneseq
    %v131 = vshrl.u32 %v130, 7
    %v132 = vsub.s32 0, %v131
    %v133 = vrot.slane %v110, %v132
    %v134 = vmul.f32 %v58, %v129
    %v135 = vmul.f32 %v59, %v129
    %v136 = vmul.f32 %v60, %v133
    %v137 = vmul.f32 %v61, %v133
    %v138 = vpack.c.bf16 %v135, %v134
    %v139 = vpack.c.bf16 %v137, %v136
    %v140 = vld [vmem:[%s0] sm:$0xff]
    %v141 = vld [vmem:[%s0 + $0x8] sm:$0xff]
    %v142 = vld [vmem:[%s0 + $0x10] sm:$0xff]
    %v143 = vld [vmem:[%s0 + $0x18] sm:$0xff]
    %v146 = vunpack.c.l.b16 %v140
    %v147 = vunpack.c.h.b16 %v140
    %v148 = vunpack.c.l.b16 %v141
    %v149 = vunpack.c.h.b16 %v141
    %v150 = vpack.c.b16 %v148, %v146
    %v151 = vpack.c.b16 %v149, %v147
    %v155 = vsel %vm41, %v138, 0
    %157 = vmatprep.subr.bf16.mxu0 %v151
    %158 = vmatpush1.bf16.msra.mxu0 %v150
    %159 = vmatprep.subr.bf16.mxu0 0
    %160 = vmatpush1.bf16.msra.mxu0 0
    %161 = vmatprep.subr.bf16.mxu0 0
    %162 = vmatpush1.bf16.msra.mxu0 0
    %163 = vmatprep.subr.bf16.mxu0 0
    %164 = vmatpush1.bf16.msra.mxu0 0
    %165 = vmatprep.subr.bf16.mxu0 0
    %166 = vmatpush1.bf16.msra.mxu0 0
    %167 = vmatprep.subr.bf16.mxu0 0
    %168 = vmatpush1.bf16.msra.mxu0 0
    %169 = vmatprep.subr.bf16.mxu0 0
    %170 = vmatpush1.bf16.msra.mxu0 0
    %171 = vmatprep.subr.bf16.mxu0 0
    %172 = vmatpush1.bf16.msra.mxu0 0
    %173 = vmatprep.subr.bf16.mxu0 0
    %174 = vmatpush1.bf16.msra.mxu0 0
    %175 = vmatprep.subr.bf16.mxu0 0
    %176 = vmatpush1.bf16.msra.mxu0 0
    %177 = vmatprep.subr.bf16.mxu0 0
    %178 = vmatpush1.bf16.msra.mxu0 0
    %179 = vmatprep.subr.bf16.mxu0 0
    %180 = vmatpush1.bf16.msra.mxu0 0
    %181 = vmatprep.subr.bf16.mxu0 0
    %182 = vmatpush1.bf16.msra.mxu0 0
    %183 = vmatprep.subr.bf16.mxu0 0
    %184 = vmatpush1.bf16.msra.mxu0 0
    %185 = vmatprep.subr.bf16.mxu0 0
    %186 = vmatpush1.bf16.msra.mxu0 0
    %187 = vmatprep.subr.bf16.mxu0 0
    %188 = vmatpush1.bf16.msra.mxu0 0
    %189 = vmatprep.mubr.bf16.mxu0 0
    %190 = vmatmul.mubr.bf16.gmra.mrb[0].mxu0 %v155
    %v191 = vpop.f32.mrb[0].mxu0
    %v192 = vadd.f32 0.0, %v191
    %v193 = vpop.f32.mrb[0].mxu0
    %v194 = vadd.f32 0.0, %v193
    %v195 = vpop.f32.mrb[0].mxu0
    %v196 = vadd.f32 0.0, %v195
    %v197 = vpop.f32.mrb[0].mxu0
    %v198 = vadd.f32 0.0, %v197
    %199 = vdwg.mxu0
    %v202 = vunpack.c.l.b16 %v142
    %v203 = vunpack.c.h.b16 %v142
    %v204 = vunpack.c.l.b16 %v143
    %v205 = vunpack.c.h.b16 %v143
    %v206 = vpack.c.b16 %v204, %v202
    %v207 = vpack.c.b16 %v205, %v203
    %v211 = vsel %vm41, %v139, 0
    %213 = vmatprep.subr.bf16.mxu0 %v207
    %214 = vmatpush1.bf16.msra.mxu0 %v206
    %215 = vmatprep.subr.bf16.mxu0 0
    %216 = vmatpush1.bf16.msra.mxu0 0
    %217 = vmatprep.subr.bf16.mxu0 0
    %218 = vmatpush1.bf16.msra.mxu0 0
    %219 = vmatprep.subr.bf16.mxu0 0
    %220 = vmatpush1.bf16.msra.mxu0 0
    %221 = vmatprep.subr.bf16.mxu0 0
    %222 = vmatpush1.bf16.msra.mxu0 0
    %223 = vmatprep.subr.bf16.mxu0 0
    %224 = vmatpush1.bf16.msra.mxu0 0
    %225 = vmatprep.subr.bf16.mxu0 0
    %226 = vmatpush1.bf16.msra.mxu0 0
    %227 = vmatprep.subr.bf16.mxu0 0
    %228 = vmatpush1.bf16.msra.mxu0 0
    %229 = vmatprep.subr.bf16.mxu0 0
    %230 = vmatpush1.bf16.msra.mxu0 0
    %231 = vmatprep.subr.bf16.mxu0 0
    %232 = vmatpush1.bf16.msra.mxu0 0
    %233 = vmatprep.subr.bf16.mxu0 0
    %234 = vmatpush1.bf16.msra.mxu0 0
    %235 = vmatprep.subr.bf16.mxu0 0
    %236 = vmatpush1.bf16.msra.mxu0 0
    %237 = vmatprep.subr.bf16.mxu0 0
    %238 = vmatpush1.bf16.msra.mxu0 0
    %239 = vmatprep.subr.bf16.mxu0 0
    %240 = vmatpush1.bf16.msra.mxu0 0
    %241 = vmatprep.subr.bf16.mxu0 0
    %242 = vmatpush1.bf16.msra.mxu0 0
    %243 = vmatprep.subr.bf16.mxu0 0
    %244 = vmatpush1.bf16.msra.mxu0 0
    %245 = vmatprep.mubr.bf16.mxu0 0
    %246 = vmatmul.mubr.bf16.gmra.mrb[0].mxu0 %v211
    %v247 = vpop.f32.mrb[0].mxu0
    %v248 = vadd.f32 0.0, %v247
    %v249 = vpop.f32.mrb[0].mxu0
    %v250 = vadd.f32 0.0, %v249
    %v251 = vpop.f32.mrb[0].mxu0
    %v252 = vadd.f32 0.0, %v251
    %v253 = vpop.f32.mrb[0].mxu0
    %v254 = vadd.f32 0.0, %v253
    %255 = vdwg.mxu0
    %v256 = vpack.c.bf16 %v196, %v192
    %v257 = vpack.c.bf16 %v198, %v194
    %v258 = vpack.c.bf16 %v252, %v248
    %v259 = vpack.c.bf16 %v254, %v250
    %v260 = vld [vmem:[%s2] sm:$0xff]
    %v261 = vld [vmem:[%s2 + $0x8] sm:$0xff]
    %v262 = vld [vmem:[%s2 + $0x10] sm:$0xff]
    %v263 = vld [vmem:[%s2 + $0x18] sm:$0xff]
    %v264 = vld [vmem:[%s2 + $0x20] sm:$0xff]
    %v265 = vld [vmem:[%s2 + $0x28] sm:$0xff]
    %v266 = vld [vmem:[%s2 + $0x30] sm:$0xff]
    %v267 = vld [vmem:[%s2 + $0x38] sm:$0xff]
    %v268 = vld [vmem:[%s2 + $0x40] sm:$0xff]
    %v269 = vld [vmem:[%s2 + $0x48] sm:$0xff]
    %v270 = vld [vmem:[%s2 + $0x50] sm:$0xff]
    %v271 = vld [vmem:[%s2 + $0x58] sm:$0xff]
    %v272 = vld [vmem:[%s2 + $0x60] sm:$0xff]
    %v273 = vld [vmem:[%s2 + $0x68] sm:$0xff]
    %v274 = vld [vmem:[%s2 + $0x70] sm:$0xff]
    %v275 = vld [vmem:[%s2 + $0x78] sm:$0xff]
    %v276 = vld [vmem:[%s2 + $0x80] sm:$0xff]
    %v277 = vld [vmem:[%s2 + $0x88] sm:$0xff]
    %v278 = vld [vmem:[%s2 + $0x90] sm:$0xff]
    %v279 = vld [vmem:[%s2 + $0x98] sm:$0xff]
    %v280 = vld [vmem:[%s2 + $0xa0] sm:$0xff]
    %v281 = vld [vmem:[%s2 + $0xa8] sm:$0xff]
    %v282 = vld [vmem:[%s2 + $0xb0] sm:$0xff]
    %v283 = vld [vmem:[%s2 + $0xb8] sm:$0xff]
    %v284 = vld [vmem:[%s2 + $0xc0] sm:$0xff]
    %v285 = vld [vmem:[%s2 + $0xc8] sm:$0xff]
    %v286 = vld [vmem:[%s2 + $0xd0] sm:$0xff]
    %v287 = vld [vmem:[%s2 + $0xd8] sm:$0xff]
    %v288 = vld [vmem:[%s2 + $0xe0] sm:$0xff]
    %v289 = vld [vmem:[%s2 + $0xe8] sm:$0xff]
    %v290 = vld [vmem:[%s2 + $0xf0] sm:$0xff]
    %v291 = vld [vmem:[%s2 + $0xf8] sm:$0xff]
    %v324 = vunpack.c.l.b16 %v260
    %v325 = vunpack.c.h.b16 %v260
    %v326 = vunpack.c.l.b16 %v261
    %v327 = vunpack.c.h.b16 %v261
    %v328 = vunpack.c.l.b16 %v262
    %v329 = vunpack.c.h.b16 %v262
    %v330 = vunpack.c.l.b16 %v263
    %v331 = vunpack.c.h.b16 %v263
    %v332 = vunpack.c.l.b16 %v264
    %v333 = vunpack.c.h.b16 %v264
    %v334 = vunpack.c.l.b16 %v265
    %v335 = vunpack.c.h.b16 %v265
    %v336 = vunpack.c.l.b16 %v266
    %v337 = vunpack.c.h.b16 %v266
    %v338 = vunpack.c.l.b16 %v267
    %v339 = vunpack.c.h.b16 %v267
    %v340 = vunpack.c.l.b16 %v268
    %v341 = vunpack.c.h.b16 %v268
    %v342 = vunpack.c.l.b16 %v269
    %v343 = vunpack.c.h.b16 %v269
    %v344 = vunpack.c.l.b16 %v270
    %v345 = vunpack.c.h.b16 %v270
    %v346 = vunpack.c.l.b16 %v271
    %v347 = vunpack.c.h.b16 %v271
    %v348 = vunpack.c.l.b16 %v272
    %v349 = vunpack.c.h.b16 %v272
    %v350 = vunpack.c.l.b16 %v273
    %v351 = vunpack.c.h.b16 %v273
    %v352 = vunpack.c.l.b16 %v274
    %v353 = vunpack.c.h.b16 %v274
    %v354 = vunpack.c.l.b16 %v275
    %v355 = vunpack.c.h.b16 %v275
    %v356 = vunpack.c.l.b16 %v276
    %v357 = vunpack.c.h.b16 %v276
    %v358 = vunpack.c.l.b16 %v277
    %v359 = vunpack.c.h.b16 %v277
    %v360 = vunpack.c.l.b16 %v278
    %v361 = vunpack.c.h.b16 %v278
    %v362 = vunpack.c.l.b16 %v279
    %v363 = vunpack.c.h.b16 %v279
    %v364 = vunpack.c.l.b16 %v280
    %v365 = vunpack.c.h.b16 %v280
    %v366 = vunpack.c.l.b16 %v281
    %v367 = vunpack.c.h.b16 %v281
    %v368 = vunpack.c.l.b16 %v282
    %v369 = vunpack.c.h.b16 %v282
    %v370 = vunpack.c.l.b16 %v283
    %v371 = vunpack.c.h.b16 %v283
    %v372 = vunpack.c.l.b16 %v284
    %v373 = vunpack.c.h.b16 %v284
    %v374 = vunpack.c.l.b16 %v285
    %v375 = vunpack.c.h.b16 %v285
    %v376 = vunpack.c.l.b16 %v286
    %v377 = vunpack.c.h.b16 %v286
    %v378 = vunpack.c.l.b16 %v287
    %v379 = vunpack.c.h.b16 %v287
    %v380 = vunpack.c.l.b16 %v288
    %v381 = vunpack.c.h.b16 %v288
    %v382 = vunpack.c.l.b16 %v289
    %v383 = vunpack.c.h.b16 %v289
    %v384 = vunpack.c.l.b16 %v290
    %v385 = vunpack.c.h.b16 %v290
    %v386 = vunpack.c.l.b16 %v291
    %v387 = vunpack.c.h.b16 %v291
    %v388 = vpack.c.b16 %v326, %v324
    %v389 = vpack.c.b16 %v327, %v325
    %v390 = vpack.c.b16 %v330, %v328
    %v391 = vpack.c.b16 %v331, %v329
    %v392 = vpack.c.b16 %v334, %v332
    %v393 = vpack.c.b16 %v335, %v333
    %v394 = vpack.c.b16 %v338, %v336
    %v395 = vpack.c.b16 %v339, %v337
    %v396 = vpack.c.b16 %v342, %v340
    %v397 = vpack.c.b16 %v343, %v341
    %v398 = vpack.c.b16 %v346, %v344
    %v399 = vpack.c.b16 %v347, %v345
    %v400 = vpack.c.b16 %v350, %v348
    %v401 = vpack.c.b16 %v351, %v349
    %v402 = vpack.c.b16 %v354, %v352
    %v403 = vpack.c.b16 %v355, %v353
    %v404 = vpack.c.b16 %v358, %v356
    %v405 = vpack.c.b16 %v359, %v357
    %v406 = vpack.c.b16 %v362, %v360
    %v407 = vpack.c.b16 %v363, %v361
    %v408 = vpack.c.b16 %v366, %v364
    %v409 = vpack.c.b16 %v367, %v365
    %v410 = vpack.c.b16 %v370, %v368
    %v411 = vpack.c.b16 %v371, %v369
    %v412 = vpack.c.b16 %v374, %v372
    %v413 = vpack.c.b16 %v375, %v373
    %v414 = vpack.c.b16 %v378, %v376
    %v415 = vpack.c.b16 %v379, %v377
    %v416 = vpack.c.b16 %v382, %v380
    %v417 = vpack.c.b16 %v383, %v381
    %v418 = vpack.c.b16 %v386, %v384
    %v419 = vpack.c.b16 %v387, %v385
    %452 = vmatprep.subr.bf16.mxu0 %v389
    %453 = vmatpush1.bf16.msra.mxu0 %v388
    %454 = vmatprep.subr.bf16.mxu0 %v391
    %455 = vmatpush1.bf16.msra.mxu0 %v390
    %456 = vmatprep.subr.bf16.mxu0 %v393
    %457 = vmatpush1.bf16.msra.mxu0 %v392
    %458 = vmatprep.subr.bf16.mxu0 %v395
    %459 = vmatpush1.bf16.msra.mxu0 %v394
    %460 = vmatprep.subr.bf16.mxu0 %v397
    %461 = vmatpush1.bf16.msra.mxu0 %v396
    %462 = vmatprep.subr.bf16.mxu0 %v399
    %463 = vmatpush1.bf16.msra.mxu0 %v398
    %464 = vmatprep.subr.bf16.mxu0 %v401
    %465 = vmatpush1.bf16.msra.mxu0 %v400
    %466 = vmatprep.subr.bf16.mxu0 %v403
    %467 = vmatpush1.bf16.msra.mxu0 %v402
    %468 = vmatprep.subr.bf16.mxu0 %v405
    %469 = vmatpush1.bf16.msra.mxu0 %v404
    %470 = vmatprep.subr.bf16.mxu0 %v407
    %471 = vmatpush1.bf16.msra.mxu0 %v406
    %472 = vmatprep.subr.bf16.mxu0 %v409
    %473 = vmatpush1.bf16.msra.mxu0 %v408
    %474 = vmatprep.subr.bf16.mxu0 %v411
    %475 = vmatpush1.bf16.msra.mxu0 %v410
    %476 = vmatprep.subr.bf16.mxu0 %v413
    %477 = vmatpush1.bf16.msra.mxu0 %v412
    %478 = vmatprep.subr.bf16.mxu0 %v415
    %479 = vmatpush1.bf16.msra.mxu0 %v414
    %480 = vmatprep.subr.bf16.mxu0 %v417
    %481 = vmatpush1.bf16.msra.mxu0 %v416
    %482 = vmatprep.subr.bf16.mxu0 %v419
    %483 = vmatpush1.bf16.msra.mxu0 %v418
    %484 = vmatprep.mubr.bf16.mxu0 %v257
    %485 = vmatmul.mubr.bf16.gmra.mrb[0].mxu0 %v256
    %v486 = vpop.f32.mrb[0].mxu0
    %v487 = vadd.f32 0.0, %v486
    %v488 = vpop.f32.mrb[0].mxu0
    %v489 = vadd.f32 0.0, %v488
    %v490 = vpop.f32.mrb[0].mxu0
    %v491 = vadd.f32 0.0, %v490
    %v492 = vpop.f32.mrb[0].mxu0
    %v493 = vadd.f32 0.0, %v492
    %494 = vmatprep.mubr.bf16.mxu0 %v259
    %495 = vmatmul.mubr.bf16.gmra.mrb[0].mxu0 %v258
    %v496 = vpop.f32.mrb[0].mxu0
    %v497 = vadd.f32 0.0, %v496
    %v498 = vpop.f32.mrb[0].mxu0
    %v499 = vadd.f32 0.0, %v498
    %v500 = vpop.f32.mrb[0].mxu0
    %v501 = vadd.f32 0.0, %v500
    %v502 = vpop.f32.mrb[0].mxu0
    %v503 = vadd.f32 0.0, %v502
    %504 = vdwg.mxu0
    %v505 = vmax.f32 %v487, 0.0
    %v506 = vmax.f32 %v489, 0.0
    %v507 = vmax.f32 %v491, 0.0
    %v508 = vmax.f32 %v493, 0.0
    %v509 = vmax.f32 %v497, 0.0
    %v510 = vmax.f32 %v499, 0.0
    %v511 = vmax.f32 %v501, 0.0
    %v512 = vmax.f32 %v503, 0.0
    %v513 = vpack.c.bf16 %v507, %v505
    %v514 = vpack.c.bf16 %v508, %v506
    %v515 = vpack.c.bf16 %v511, %v509
    %v516 = vpack.c.bf16 %v512, %v510
    %517 = vmatprep.subr.bf16.mxu0 %v514
    %518 = vmatpush1.bf16.msra.mxu0 %v513
    %519 = vmatprep.subr.bf16.mxu0 0
    %520 = vmatpush1.bf16.msra.mxu0 0
    %521 = vmatprep.subr.bf16.mxu0 0
    %522 = vmatpush1.bf16.msra.mxu0 0
    %523 = vmatprep.subr.bf16.mxu0 0
    %524 = vmatpush1.bf16.msra.mxu0 0
    %525 = vmatprep.subr.bf16.mxu0 0
    %526 = vmatpush1.bf16.msra.mxu0 0
    %527 = vmatprep.subr.bf16.mxu0 0
    %528 = vmatpush1.bf16.msra.mxu0 0
    %529 = vmatprep.subr.bf16.mxu0 0
    %530 = vmatpush1.bf16.msra.mxu0 0
    %531 = vmatprep.subr.bf16.mxu0 0
    %532 = vmatpush1.bf16.msra.mxu0 0
    %533 = vmatprep.subr.bf16.mxu0 0
    %534 = vmatpush1.bf16.msra.mxu0 0
    %535 = vmatprep.subr.bf16.mxu0 0
    %536 = vmatpush1.bf16.msra.mxu0 0
    %537 = vmatprep.subr.bf16.mxu0 0
    %538 = vmatpush1.bf16.msra.mxu0 0
    %539 = vmatprep.subr.bf16.mxu0 0
    %540 = vmatpush1.bf16.msra.mxu0 0
    %541 = vmatprep.subr.bf16.mxu0 0
    %542 = vmatpush1.bf16.msra.mxu0 0
    %543 = vmatprep.subr.bf16.mxu0 0
    %544 = vmatpush1.bf16.msra.mxu0 0
    %545 = vmatprep.subr.bf16.mxu0 0
    %546 = vmatpush1.bf16.msra.mxu0 0
    %547 = vmatprep.subr.bf16.mxu0 0
    %548 = vmatpush1.bf16.msra.mxu0 0
    %549 = vmatprep.mubr.bf16.mxu0 0
    %550 = vmatmul.mubr.bf16.gmra.mrb[0].mxu0 %v155
    %v551 = vpop.f32.mrb[0].mxu0
    %v552 = vadd.f32 0.0, %v551
    %v553 = vpop.f32.mrb[0].mxu0
    %v554 = vadd.f32 0.0, %v553
    %v555 = vpop.f32.mrb[0].mxu0
    %v556 = vadd.f32 0.0, %v555
    %v557 = vpop.f32.mrb[0].mxu0
    %v558 = vadd.f32 0.0, %v557
    %559 = vdwg.mxu0
    %560 = vmatprep.subr.bf16.mxu0 %v516
    %561 = vmatpush1.bf16.msra.mxu0 %v515
    %562 = vmatprep.subr.bf16.mxu0 0
    %563 = vmatpush1.bf16.msra.mxu0 0
    %564 = vmatprep.subr.bf16.mxu0 0
    %565 = vmatpush1.bf16.msra.mxu0 0
    %566 = vmatprep.subr.bf16.mxu0 0
    %567 = vmatpush1.bf16.msra.mxu0 0
    %568 = vmatprep.subr.bf16.mxu0 0
    %569 = vmatpush1.bf16.msra.mxu0 0
    %570 = vmatprep.subr.bf16.mxu0 0
    %571 = vmatpush1.bf16.msra.mxu0 0
    %572 = vmatprep.subr.bf16.mxu0 0
    %573 = vmatpush1.bf16.msra.mxu0 0
    %574 = vmatprep.subr.bf16.mxu0 0
    %575 = vmatpush1.bf16.msra.mxu0 0
    %576 = vmatprep.subr.bf16.mxu0 0
    %577 = vmatpush1.bf16.msra.mxu0 0
    %578 = vmatprep.subr.bf16.mxu0 0
    %579 = vmatpush1.bf16.msra.mxu0 0
    %580 = vmatprep.subr.bf16.mxu0 0
    %581 = vmatpush1.bf16.msra.mxu0 0
    %582 = vmatprep.subr.bf16.mxu0 0
    %583 = vmatpush1.bf16.msra.mxu0 0
    %584 = vmatprep.subr.bf16.mxu0 0
    %585 = vmatpush1.bf16.msra.mxu0 0
    %586 = vmatprep.subr.bf16.mxu0 0
    %587 = vmatpush1.bf16.msra.mxu0 0
    %588 = vmatprep.subr.bf16.mxu0 0
    %589 = vmatpush1.bf16.msra.mxu0 0
    %590 = vmatprep.subr.bf16.mxu0 0
    %591 = vmatpush1.bf16.msra.mxu0 0
    %592 = vmatprep.mubr.bf16.mxu0 0
    %593 = vmatmul.mubr.bf16.gmra.mrb[0].mxu0 %v211
    %v594 = vpop.f32.mrb[0].mxu0
    %v595 = vadd.f32 0.0, %v594
    %v596 = vpop.f32.mrb[0].mxu0
    %v597 = vadd.f32 0.0, %v596
    %v598 = vpop.f32.mrb[0].mxu0
    %v599 = vadd.f32 0.0, %v598
    %v600 = vpop.f32.mrb[0].mxu0
    %v601 = vadd.f32 0.0, %v600
    %602 = vdwg.mxu0
    %v603 = vpack.c.bf16 %v556, %v552
    %v604 = vpack.c.bf16 %v558, %v554
    %v605 = vpack.c.bf16 %v599, %v595
    %v606 = vpack.c.bf16 %v601, %v597
    %v607 = vld [vmem:[%s3] sm:$0xf]
    %v608 = vld [vmem:[%s3 + $0x4] sm:$0xf]
    %v609 = vld [vmem:[%s3 + $0x8] sm:$0xf]
    %v610 = vld [vmem:[%s3 + $0xc] sm:$0xf]
    %v611 = vld [vmem:[%s3 + $0x10] sm:$0xf]
    %v612 = vld [vmem:[%s3 + $0x14] sm:$0xf]
    %v613 = vld [vmem:[%s3 + $0x18] sm:$0xf]
    %v614 = vld [vmem:[%s3 + $0x1c] sm:$0xf]
    %v615 = vld [vmem:[%s3 + $0x20] sm:$0xf]
    %v616 = vld [vmem:[%s3 + $0x24] sm:$0xf]
    %v617 = vld [vmem:[%s3 + $0x28] sm:$0xf]
    %v618 = vld [vmem:[%s3 + $0x2c] sm:$0xf]
    %v619 = vld [vmem:[%s3 + $0x30] sm:$0xf]
    %v620 = vld [vmem:[%s3 + $0x34] sm:$0xf]
    %v621 = vld [vmem:[%s3 + $0x38] sm:$0xf]
    %v622 = vld [vmem:[%s3 + $0x3c] sm:$0xf]
    %v623 = vld [vmem:[%s3 + $0x40] sm:$0xf]
    %v624 = vld [vmem:[%s3 + $0x44] sm:$0xf]
    %v625 = vld [vmem:[%s3 + $0x48] sm:$0xf]
    %v626 = vld [vmem:[%s3 + $0x4c] sm:$0xf]
    %v627 = vld [vmem:[%s3 + $0x50] sm:$0xf]
    %v628 = vld [vmem:[%s3 + $0x54] sm:$0xf]
    %v629 = vld [vmem:[%s3 + $0x58] sm:$0xf]
    %v630 = vld [vmem:[%s3 + $0x5c] sm:$0xf]
    %v631 = vld [vmem:[%s3 + $0x60] sm:$0xf]
    %v632 = vld [vmem:[%s3 + $0x64] sm:$0xf]
    %v633 = vld [vmem:[%s3 + $0x68] sm:$0xf]
    %v634 = vld [vmem:[%s3 + $0x6c] sm:$0xf]
    %v635 = vld [vmem:[%s3 + $0x70] sm:$0xf]
    %v636 = vld [vmem:[%s3 + $0x74] sm:$0xf]
    %v637 = vld [vmem:[%s3 + $0x78] sm:$0xf]
    %v638 = vld [vmem:[%s3 + $0x7c] sm:$0xf]
    %v671 = vunpack.c.l.b16 %v607
    %v672 = vunpack.c.l.b16 %v608
    %v673 = vunpack.c.l.b16 %v609
    %v674 = vunpack.c.l.b16 %v610
    %v675 = vunpack.c.l.b16 %v611
    %v676 = vunpack.c.l.b16 %v612
    %v677 = vunpack.c.l.b16 %v613
    %v678 = vunpack.c.l.b16 %v614
    %v679 = vunpack.c.l.b16 %v615
    %v680 = vunpack.c.l.b16 %v616
    %v681 = vunpack.c.l.b16 %v617
    %v682 = vunpack.c.l.b16 %v618
    %v683 = vunpack.c.l.b16 %v619
    %v684 = vunpack.c.l.b16 %v620
    %v685 = vunpack.c.l.b16 %v621
    %v686 = vunpack.c.l.b16 %v622
    %v687 = vunpack.c.l.b16 %v623
    %v688 = vunpack.c.l.b16 %v624
    %v689 = vunpack.c.l.b16 %v625
    %v690 = vunpack.c.l.b16 %v626
    %v691 = vunpack.c.l.b16 %v627
    %v692 = vunpack.c.l.b16 %v628
    %v693 = vunpack.c.l.b16 %v629
    %v694 = vunpack.c.l.b16 %v630
    %v695 = vunpack.c.l.b16 %v631
    %v696 = vunpack.c.l.b16 %v632
    %v697 = vunpack.c.l.b16 %v633
    %v698 = vunpack.c.l.b16 %v634
    %v699 = vunpack.c.l.b16 %v635
    %v700 = vunpack.c.l.b16 %v636
    %v701 = vunpack.c.l.b16 %v637
    %v702 = vunpack.c.l.b16 %v638
    %v703 = vpack.c.b16 %v672, %v671
    %v704 = vpack.c.b16 %v674, %v673
    %v705 = vpack.c.b16 %v676, %v675
    %v706 = vpack.c.b16 %v678, %v677
    %v707 = vpack.c.b16 %v680, %v679
    %v708 = vpack.c.b16 %v682, %v681
    %v709 = vpack.c.b16 %v684, %v683
    %v710 = vpack.c.b16 %v686, %v685
    %v711 = vpack.c.b16 %v688, %v687
    %v712 = vpack.c.b16 %v690, %v689
    %v713 = vpack.c.b16 %v692, %v691
    %v714 = vpack.c.b16 %v694, %v693
    %v715 = vpack.c.b16 %v696, %v695
    %v716 = vpack.c.b16 %v698, %v697
    %v717 = vpack.c.b16 %v700, %v699
    %v718 = vpack.c.b16 %v702, %v701
    %735 = vmatprep.subr.bf16.mxu0 0
    %736 = vmatpush1.bf16.msra.mxu0 %v703
    %737 = vmatprep.subr.bf16.mxu0 0
    %738 = vmatpush1.bf16.msra.mxu0 %v704
    %739 = vmatprep.subr.bf16.mxu0 0
    %740 = vmatpush1.bf16.msra.mxu0 %v705
    %741 = vmatprep.subr.bf16.mxu0 0
    %742 = vmatpush1.bf16.msra.mxu0 %v706
    %743 = vmatprep.subr.bf16.mxu0 0
    %744 = vmatpush1.bf16.msra.mxu0 %v707
    %745 = vmatprep.subr.bf16.mxu0 0
    %746 = vmatpush1.bf16.msra.mxu0 %v708
    %747 = vmatprep.subr.bf16.mxu0 0
    %748 = vmatpush1.bf16.msra.mxu0 %v709
    %749 = vmatprep.subr.bf16.mxu0 0
    %750 = vmatpush1.bf16.msra.mxu0 %v710
    %751 = vmatprep.subr.bf16.mxu0 0
    %752 = vmatpush1.bf16.msra.mxu0 %v711
    %753 = vmatprep.subr.bf16.mxu0 0
    %754 = vmatpush1.bf16.msra.mxu0 %v712
    %755 = vmatprep.subr.bf16.mxu0 0
    %756 = vmatpush1.bf16.msra.mxu0 %v713
    %757 = vmatprep.subr.bf16.mxu0 0
    %758 = vmatpush1.bf16.msra.mxu0 %v714
    %759 = vmatprep.subr.bf16.mxu0 0
    %760 = vmatpush1.bf16.msra.mxu0 %v715
    %761 = vmatprep.subr.bf16.mxu0 0
    %762 = vmatpush1.bf16.msra.mxu0 %v716
    %763 = vmatprep.subr.bf16.mxu0 0
    %764 = vmatpush1.bf16.msra.mxu0 %v717
    %765 = vmatprep.subr.bf16.mxu0 0
    %766 = vmatpush1.bf16.msra.mxu0 %v718
    %767 = vmatprep.mubr.bf16.mxu0 %v604
    %768 = vmatmul.mubr.bf16.gmra.mrb[0].mxu0 %v603
    %v769 = vpop.f32.mrb[0].mxu0
    %v770 = vadd.f32 0.0, %v769
    %v771 = vpop.f32.mrb[0].mxu0
    %v772 = vpop.f32.mrb[0].mxu0
    %v773 = vadd.f32 0.0, %v772
    %v774 = vpop.f32.mrb[0].mxu0
    %775 = vmatprep.mubr.bf16.mxu0 %v606
    %776 = vmatmul.mubr.bf16.gmra.mrb[0].mxu0 %v605
    %v777 = vpop.f32.mrb[0].mxu0
    %v778 = vadd.f32 0.0, %v777
    %v779 = vpop.f32.mrb[0].mxu0
    %v780 = vpop.f32.mrb[0].mxu0
    %v781 = vadd.f32 0.0, %v780
    %v782 = vpop.f32.mrb[0].mxu0
    %783 = vdwg.mxu0
    %v784 = vmax.f32 %v770, 0.0
    %v785 = vmax.f32 %v773, 0.0
    %v786 = vmax.f32 %v778, 0.0
    %v787 = vmax.f32 %v781, 0.0
    %v788 = vpack.c.bf16 %v785, %v784
    %v789 = vpack.c.bf16 %v787, %v786
    %790 = vmatprep.subr.bf16.mxu0 0
    %791 = vmatpush1.bf16.msra.mxu0 %v788
    %792 = vmatprep.subr.bf16.mxu0 0
    %793 = vmatpush1.bf16.msra.mxu0 0
    %794 = vmatprep.subr.bf16.mxu0 0
    %795 = vmatpush1.bf16.msra.mxu0 0
    %796 = vmatprep.subr.bf16.mxu0 0
    %797 = vmatpush1.bf16.msra.mxu0 0
    %798 = vmatprep.subr.bf16.mxu0 0
    %799 = vmatpush1.bf16.msra.mxu0 0
    %800 = vmatprep.subr.bf16.mxu0 0
    %801 = vmatpush1.bf16.msra.mxu0 0
    %802 = vmatprep.subr.bf16.mxu0 0
    %803 = vmatpush1.bf16.msra.mxu0 0
    %804 = vmatprep.subr.bf16.mxu0 0
    %805 = vmatpush1.bf16.msra.mxu0 0
    %806 = vmatprep.subr.bf16.mxu0 0
    %807 = vmatpush1.bf16.msra.mxu0 0
    %808 = vmatprep.subr.bf16.mxu0 0
    %809 = vmatpush1.bf16.msra.mxu0 0
    %810 = vmatprep.subr.bf16.mxu0 0
    %811 = vmatpush1.bf16.msra.mxu0 0
    %812 = vmatprep.subr.bf16.mxu0 0
    %813 = vmatpush1.bf16.msra.mxu0 0
    %814 = vmatprep.subr.bf16.mxu0 0
    %815 = vmatpush1.bf16.msra.mxu0 0
    %816 = vmatprep.subr.bf16.mxu0 0
    %817 = vmatpush1.bf16.msra.mxu0 0
    %818 = vmatprep.subr.bf16.mxu0 0
    %819 = vmatpush1.bf16.msra.mxu0 0
    %820 = vmatprep.subr.bf16.mxu0 0
    %821 = vmatpush1.bf16.msra.mxu0 0
    %822 = vmatprep.mubr.bf16.mxu0 0
    %823 = vmatmul.mubr.bf16.gmra.mrb[0].mxu0 %v155
    %v824 = vpop.f32.mrb[0].mxu0
    %v825 = vadd.f32 0.0, %v824
    %v826 = vpop.f32.mrb[0].mxu0
    %v827 = vpop.f32.mrb[0].mxu0
    %v828 = vadd.f32 0.0, %v827
    %v829 = vpop.f32.mrb[0].mxu0
    %830 = vdwg.mxu0
    %831 = vmatprep.subr.bf16.mxu0 0
    %832 = vmatpush1.bf16.msra.mxu0 %v789
    %833 = vmatprep.subr.bf16.mxu0 0
    %834 = vmatpush1.bf16.msra.mxu0 0
    %835 = vmatprep.subr.bf16.mxu0 0
    %836 = vmatpush1.bf16.msra.mxu0 0
    %837 = vmatprep.subr.bf16.mxu0 0
    %838 = vmatpush1.bf16.msra.mxu0 0
    %839 = vmatprep.subr.bf16.mxu0 0
    %840 = vmatpush1.bf16.msra.mxu0 0
    %841 = vmatprep.subr.bf16.mxu0 0
    %842 = vmatpush1.bf16.msra.mxu0 0
    %843 = vmatprep.subr.bf16.mxu0 0
    %844 = vmatpush1.bf16.msra.mxu0 0
    %845 = vmatprep.subr.bf16.mxu0 0
    %846 = vmatpush1.bf16.msra.mxu0 0
    %847 = vmatprep.subr.bf16.mxu0 0
    %848 = vmatpush1.bf16.msra.mxu0 0
    %849 = vmatprep.subr.bf16.mxu0 0
    %850 = vmatpush1.bf16.msra.mxu0 0
    %851 = vmatprep.subr.bf16.mxu0 0
    %852 = vmatpush1.bf16.msra.mxu0 0
    %853 = vmatprep.subr.bf16.mxu0 0
    %854 = vmatpush1.bf16.msra.mxu0 0
    %855 = vmatprep.subr.bf16.mxu0 0
    %856 = vmatpush1.bf16.msra.mxu0 0
    %857 = vmatprep.subr.bf16.mxu0 0
    %858 = vmatpush1.bf16.msra.mxu0 0
    %859 = vmatprep.subr.bf16.mxu0 0
    %860 = vmatpush1.bf16.msra.mxu0 0
    %861 = vmatprep.subr.bf16.mxu0 0
    %862 = vmatpush1.bf16.msra.mxu0 0
    %863 = vmatprep.mubr.bf16.mxu0 0
    %864 = vmatmul.mubr.bf16.gmra.mrb[0].mxu0 %v211
    %v865 = vpop.f32.mrb[0].mxu0
    %v866 = vadd.f32 0.0, %v865
    %v867 = vpop.f32.mrb[0].mxu0
    %v868 = vpop.f32.mrb[0].mxu0
    %v869 = vadd.f32 0.0, %v868
    %v870 = vpop.f32.mrb[0].mxu0
    %871 = vdwg.mxu0
    %v872 = vpack.c.bf16 %v828, %v825
    %v873 = vpack.c.bf16 %v869, %v866
    %v874 = vld [vmem:[%s4] sm:$0xf]
    %v875 = vld [vmem:[%s4 + $0x4] sm:$0xf]
    %v876 = vld [vmem:[%s4 + $0x8] sm:$0xf]
    %v877 = vld [vmem:[%s4 + $0xc] sm:$0xf]
    %v878 = vld [vmem:[%s4 + $0x10] sm:$0xf]
    %v879 = vld [vmem:[%s4 + $0x14] sm:$0xf]
    %v880 = vld [vmem:[%s4 + $0x18] sm:$0xf]
    %v881 = vld [vmem:[%s4 + $0x1c] sm:$0xf]
    %v882 = vld [vmem:[%s4 + $0x20] sm:$0xf]
    %v883 = vld [vmem:[%s4 + $0x24] sm:$0xf]
    %v884 = vld [vmem:[%s4 + $0x28] sm:$0xf]
    %v885 = vld [vmem:[%s4 + $0x2c] sm:$0xf]
    %v886 = vld [vmem:[%s4 + $0x30] sm:$0xf]
    %v887 = vld [vmem:[%s4 + $0x34] sm:$0xf]
    %v888 = vld [vmem:[%s4 + $0x38] sm:$0xf]
    %v889 = vld [vmem:[%s4 + $0x3c] sm:$0xf]
    %v906 = vunpack.c.l.b16 %v874
    %v907 = vunpack.c.l.b16 %v875
    %v908 = vunpack.c.l.b16 %v876
    %v909 = vunpack.c.l.b16 %v877
    %v910 = vunpack.c.l.b16 %v878
    %v911 = vunpack.c.l.b16 %v879
    %v912 = vunpack.c.l.b16 %v880
    %v913 = vunpack.c.l.b16 %v881
    %v914 = vunpack.c.l.b16 %v882
    %v915 = vunpack.c.l.b16 %v883
    %v916 = vunpack.c.l.b16 %v884
    %v917 = vunpack.c.l.b16 %v885
    %v918 = vunpack.c.l.b16 %v886
    %v919 = vunpack.c.l.b16 %v887
    %v920 = vunpack.c.l.b16 %v888
    %v921 = vunpack.c.l.b16 %v889
    %v922 = vpack.c.b16 %v907, %v906
    %v923 = vpack.c.b16 %v909, %v908
    %v924 = vpack.c.b16 %v911, %v910
    %v925 = vpack.c.b16 %v913, %v912
    %v926 = vpack.c.b16 %v915, %v914
    %v927 = vpack.c.b16 %v917, %v916
    %v928 = vpack.c.b16 %v919, %v918
    %v929 = vpack.c.b16 %v921, %v920
    %938 = vmatprep.subr.bf16.mxu0 0
    %939 = vmatpush1.bf16.msra.mxu0 %v922
    %940 = vmatprep.subr.bf16.mxu0 0
    %941 = vmatpush1.bf16.msra.mxu0 %v923
    %942 = vmatprep.subr.bf16.mxu0 0
    %943 = vmatpush1.bf16.msra.mxu0 %v924
    %944 = vmatprep.subr.bf16.mxu0 0
    %945 = vmatpush1.bf16.msra.mxu0 %v925
    %946 = vmatprep.subr.bf16.mxu0 0
    %947 = vmatpush1.bf16.msra.mxu0 %v926
    %948 = vmatprep.subr.bf16.mxu0 0
    %949 = vmatpush1.bf16.msra.mxu0 %v927
    %950 = vmatprep.subr.bf16.mxu0 0
    %951 = vmatpush1.bf16.msra.mxu0 %v928
    %952 = vmatprep.subr.bf16.mxu0 0
    %953 = vmatpush1.bf16.msra.mxu0 %v929
    %954 = vmatprep.subr.bf16.mxu0 0
    %955 = vmatpush1.bf16.msra.mxu0 0
    %956 = vmatprep.subr.bf16.mxu0 0
    %957 = vmatpush1.bf16.msra.mxu0 0
    %958 = vmatprep.subr.bf16.mxu0 0
    %959 = vmatpush1.bf16.msra.mxu0 0
    %960 = vmatprep.subr.bf16.mxu0 0
    %961 = vmatpush1.bf16.msra.mxu0 0
    %962 = vmatprep.subr.bf16.mxu0 0
    %963 = vmatpush1.bf16.msra.mxu0 0
    %964 = vmatprep.subr.bf16.mxu0 0
    %965 = vmatpush1.bf16.msra.mxu0 0
    %966 = vmatprep.subr.bf16.mxu0 0
    %967 = vmatpush1.bf16.msra.mxu0 0
    %968 = vmatprep.subr.bf16.mxu0 0
    %969 = vmatpush1.bf16.msra.mxu0 0
    %970 = vmatprep.mubr.bf16.mxu0 0
    %971 = vmatmul.mubr.bf16.gmra.mrb[0].mxu0 %v872
    %v972 = vpop.f32.mrb[0].mxu0
    %v973 = vadd.f32 0.0, %v972
    %v974 = vpop.f32.mrb[0].mxu0
    %v975 = vpop.f32.mrb[0].mxu0
    %v976 = vadd.f32 0.0, %v975
    %v977 = vpop.f32.mrb[0].mxu0
    %978 = vmatprep.mubr.bf16.mxu0 0
    %979 = vmatmul.mubr.bf16.gmra.mrb[0].mxu0 %v873
    %v980 = vpop.f32.mrb[0].mxu0
    %v981 = vadd.f32 0.0, %v980
    %v982 = vpop.f32.mrb[0].mxu0
    %v983 = vpop.f32.mrb[0].mxu0
    %v984 = vadd.f32 0.0, %v983
    %v985 = vpop.f32.mrb[0].mxu0
    %986 = vdwg.mxu0
    %v987 = vmax.f32 %v973, 0.0
    %v988 = vmax.f32 %v976, 0.0
    %v989 = vmax.f32 %v981, 0.0
    %v990 = vmax.f32 %v984, 0.0
    %v991 = vpack.c.bf16 %v988, %v987
    %v992 = vpack.c.bf16 %v990, %v989
    %993 = vmatprep.subr.bf16.mxu0 0
    %994 = vmatpush1.bf16.msra.mxu0 %v991
    %995 = vmatprep.subr.bf16.mxu0 0
    %996 = vmatpush1.bf16.msra.mxu0 0
    %997 = vmatprep.subr.bf16.mxu0 0
    %998 = vmatpush1.bf16.msra.mxu0 0
    %999 = vmatprep.subr.bf16.mxu0 0
    %1000 = vmatpush1.bf16.msra.mxu0 0
    %1001 = vmatprep.subr.bf16.mxu0 0
    %1002 = vmatpush1.bf16.msra.mxu0 0
    %1003 = vmatprep.subr.bf16.mxu0 0
    %1004 = vmatpush1.bf16.msra.mxu0 0
    %1005 = vmatprep.subr.bf16.mxu0 0
    %1006 = vmatpush1.bf16.msra.mxu0 0
    %1007 = vmatprep.subr.bf16.mxu0 0
    %1008 = vmatpush1.bf16.msra.mxu0 0
    %1009 = vmatprep.subr.bf16.mxu0 0
    %1010 = vmatpush1.bf16.msra.mxu0 0
    %1011 = vmatprep.subr.bf16.mxu0 0
    %1012 = vmatpush1.bf16.msra.mxu0 0
    %1013 = vmatprep.subr.bf16.mxu0 0
    %1014 = vmatpush1.bf16.msra.mxu0 0
    %1015 = vmatprep.subr.bf16.mxu0 0
    %1016 = vmatpush1.bf16.msra.mxu0 0
    %1017 = vmatprep.subr.bf16.mxu0 0
    %1018 = vmatpush1.bf16.msra.mxu0 0
    %1019 = vmatprep.subr.bf16.mxu0 0
    %1020 = vmatpush1.bf16.msra.mxu0 0
    %1021 = vmatprep.subr.bf16.mxu0 0
    %1022 = vmatpush1.bf16.msra.mxu0 0
    %1023 = vmatprep.subr.bf16.mxu0 0
    %1024 = vmatpush1.bf16.msra.mxu0 0
    %1025 = vmatprep.mubr.bf16.mxu0 0
    %1026 = vmatmul.mubr.bf16.gmra.mrb[0].mxu0 %v155
    %v1027 = vpop.f32.mrb[0].mxu0
    %v1028 = vadd.f32 0.0, %v1027
    %v1029 = vpop.f32.mrb[0].mxu0
    %v1030 = vpop.f32.mrb[0].mxu0
    %v1031 = vadd.f32 0.0, %v1030
    %v1032 = vpop.f32.mrb[0].mxu0
    %1033 = vdwg.mxu0
    %1034 = vmatprep.subr.bf16.mxu0 0
    %1035 = vmatpush1.bf16.msra.mxu0 %v992
    %1036 = vmatprep.subr.bf16.mxu0 0
    %1037 = vmatpush1.bf16.msra.mxu0 0
    %1038 = vmatprep.subr.bf16.mxu0 0
    %1039 = vmatpush1.bf16.msra.mxu0 0
    %1040 = vmatprep.subr.bf16.mxu0 0
    %1041 = vmatpush1.bf16.msra.mxu0 0
    %1042 = vmatprep.subr.bf16.mxu0 0
    %1043 = vmatpush1.bf16.msra.mxu0 0
    %1044 = vmatprep.subr.bf16.mxu0 0
    %1045 = vmatpush1.bf16.msra.mxu0 0
    %1046 = vmatprep.subr.bf16.mxu0 0
    %1047 = vmatpush1.bf16.msra.mxu0 0
    %1048 = vmatprep.subr.bf16.mxu0 0
    %1049 = vmatpush1.bf16.msra.mxu0 0
    %1050 = vmatprep.subr.bf16.mxu0 0
    %1051 = vmatpush1.bf16.msra.mxu0 0
    %1052 = vmatprep.subr.bf16.mxu0 0
    %1053 = vmatpush1.bf16.msra.mxu0 0
    %1054 = vmatprep.subr.bf16.mxu0 0
    %1055 = vmatpush1.bf16.msra.mxu0 0
    %1056 = vmatprep.subr.bf16.mxu0 0
    %1057 = vmatpush1.bf16.msra.mxu0 0
    %1058 = vmatprep.subr.bf16.mxu0 0
    %1059 = vmatpush1.bf16.msra.mxu0 0
    %1060 = vmatprep.subr.bf16.mxu0 0
    %1061 = vmatpush1.bf16.msra.mxu0 0
    %1062 = vmatprep.subr.bf16.mxu0 0
    %1063 = vmatpush1.bf16.msra.mxu0 0
    %1064 = vmatprep.subr.bf16.mxu0 0
    %1065 = vmatpush1.bf16.msra.mxu0 0
    %1066 = vmatprep.mubr.bf16.mxu0 0
    %1067 = vmatmul.mubr.bf16.gmra.mrb[0].mxu0 %v211
    %v1068 = vpop.f32.mrb[0].mxu0
    %v1069 = vadd.f32 0.0, %v1068
    %v1070 = vpop.f32.mrb[0].mxu0
    %v1071 = vpop.f32.mrb[0].mxu0
    %v1072 = vadd.f32 0.0, %v1071
    %v1073 = vpop.f32.mrb[0].mxu0
    %1074 = vdwg.mxu0
    %v1075 = vpack.c.bf16 %v1031, %v1028
    %v1076 = vpack.c.bf16 %v1072, %v1069
    %v1077 = vld [vmem:[%s5] sm:$0xf]
    %v1078 = vld [vmem:[%s5 + $0x4] sm:$0xf]
    %v1079 = vld [vmem:[%s5 + $0x8] sm:$0xf]
    %v1080 = vld [vmem:[%s5 + $0xc] sm:$0xf]
    %v1081 = vld [vmem:[%s5 + $0x10] sm:$0xf]
    %v1082 = vld [vmem:[%s5 + $0x14] sm:$0xf]
    %v1083 = vld [vmem:[%s5 + $0x18] sm:$0xf]
    %v1084 = vld [vmem:[%s5 + $0x1c] sm:$0xf]
    %v1085 = vld [vmem:[%s5 + $0x20] sm:$0xf]
    %v1086 = vld [vmem:[%s5 + $0x24] sm:$0xf]
    %v1087 = vld [vmem:[%s5 + $0x28] sm:$0xf]
    %v1088 = vld [vmem:[%s5 + $0x2c] sm:$0xf]
    %v1089 = vld [vmem:[%s5 + $0x30] sm:$0xf]
    %v1090 = vld [vmem:[%s5 + $0x34] sm:$0xf]
    %v1091 = vld [vmem:[%s5 + $0x38] sm:$0xf]
    %v1092 = vld [vmem:[%s5 + $0x3c] sm:$0xf]
    %v1109 = vunpack.c.l.b16 %v1077
    %v1110 = vunpack.c.l.b16 %v1078
    %v1111 = vunpack.c.l.b16 %v1079
    %v1112 = vunpack.c.l.b16 %v1080
    %v1113 = vunpack.c.l.b16 %v1081
    %v1114 = vunpack.c.l.b16 %v1082
    %v1115 = vunpack.c.l.b16 %v1083
    %v1116 = vunpack.c.l.b16 %v1084
    %v1117 = vunpack.c.l.b16 %v1085
    %v1118 = vunpack.c.l.b16 %v1086
    %v1119 = vunpack.c.l.b16 %v1087
    %v1120 = vunpack.c.l.b16 %v1088
    %v1121 = vunpack.c.l.b16 %v1089
    %v1122 = vunpack.c.l.b16 %v1090
    %v1123 = vunpack.c.l.b16 %v1091
    %v1124 = vunpack.c.l.b16 %v1092
    %v1125 = vpack.c.b16 %v1110, %v1109
    %v1126 = vpack.c.b16 %v1112, %v1111
    %v1127 = vpack.c.b16 %v1114, %v1113
    %v1128 = vpack.c.b16 %v1116, %v1115
    %v1129 = vpack.c.b16 %v1118, %v1117
    %v1130 = vpack.c.b16 %v1120, %v1119
    %v1131 = vpack.c.b16 %v1122, %v1121
    %v1132 = vpack.c.b16 %v1124, %v1123
    %1141 = vmatprep.subr.bf16.mxu0 0
    %1142 = vmatpush1.bf16.msra.mxu0 %v1125
    %1143 = vmatprep.subr.bf16.mxu0 0
    %1144 = vmatpush1.bf16.msra.mxu0 %v1126
    %1145 = vmatprep.subr.bf16.mxu0 0
    %1146 = vmatpush1.bf16.msra.mxu0 %v1127
    %1147 = vmatprep.subr.bf16.mxu0 0
    %1148 = vmatpush1.bf16.msra.mxu0 %v1128
    %1149 = vmatprep.subr.bf16.mxu0 0
    %1150 = vmatpush1.bf16.msra.mxu0 %v1129
    %1151 = vmatprep.subr.bf16.mxu0 0
    %1152 = vmatpush1.bf16.msra.mxu0 %v1130
    %1153 = vmatprep.subr.bf16.mxu0 0
    %1154 = vmatpush1.bf16.msra.mxu0 %v1131
    %1155 = vmatprep.subr.bf16.mxu0 0
    %1156 = vmatpush1.bf16.msra.mxu0 %v1132
    %1157 = vmatprep.subr.bf16.mxu0 0
    %1158 = vmatpush1.bf16.msra.mxu0 0
    %1159 = vmatprep.subr.bf16.mxu0 0
    %1160 = vmatpush1.bf16.msra.mxu0 0
    %1161 = vmatprep.subr.bf16.mxu0 0
    %1162 = vmatpush1.bf16.msra.mxu0 0
    %1163 = vmatprep.subr.bf16.mxu0 0
    %1164 = vmatpush1.bf16.msra.mxu0 0
    %1165 = vmatprep.subr.bf16.mxu0 0
    %1166 = vmatpush1.bf16.msra.mxu0 0
    %1167 = vmatprep.subr.bf16.mxu0 0
    %1168 = vmatpush1.bf16.msra.mxu0 0
    %1169 = vmatprep.subr.bf16.mxu0 0
    %1170 = vmatpush1.bf16.msra.mxu0 0
    %1171 = vmatprep.subr.bf16.mxu0 0
    %1172 = vmatpush1.bf16.msra.mxu0 0
    %1173 = vmatprep.mubr.bf16.mxu0 0
    %1174 = vmatmul.mubr.bf16.gmra.mrb[0].mxu0 %v1075
    %v1175 = vpop.f32.mrb[0].mxu0
    %v1176 = vadd.f32 0.0, %v1175
    %v1177 = vpop.f32.mrb[0].mxu0
    %v1178 = vpop.f32.mrb[0].mxu0
    %v1179 = vadd.f32 0.0, %v1178
    %v1180 = vpop.f32.mrb[0].mxu0
    %1181 = vmatprep.mubr.bf16.mxu0 0
    %1182 = vmatmul.mubr.bf16.gmra.mrb[0].mxu0 %v1076
    %v1183 = vpop.f32.mrb[0].mxu0
    %v1184 = vadd.f32 0.0, %v1183
    %v1185 = vpop.f32.mrb[0].mxu0
    %v1186 = vpop.f32.mrb[0].mxu0
    %v1187 = vadd.f32 0.0, %v1186
    %v1188 = vpop.f32.mrb[0].mxu0
    %1189 = vdwg.mxu0
    %vm1190 = vcmask 523264
    %v1191 = vsel %vm1190, %v1176, 0.0
    %v1192 = vsel %vm1190, %v1179, 0.0
    %v1193 = vadd.f32 %v1191, %v1192
    %v1194 = vrot.slane %v1193, 4
    %v1195 = vadd.f32 %v1193, %v1194
    %v1196 = vrot.slane %v1195, 2
    %v1197 = vadd.f32 %v1195, %v1196
    %v1198 = vrot.slane %v1197, 1
    %v1199 = vadd.f32 %v1197, %v1198
    %v1200 = vsel %vm1190, %v1184, 0.0
    %v1201 = vsel %vm1190, %v1187, 0.0
    %v1202 = vadd.f32 %v1200, %v1201
    %v1203 = vrot.slane %v1202, 4
    %v1204 = vadd.f32 %v1202, %v1203
    %v1205 = vrot.slane %v1204, 2
    %v1206 = vadd.f32 %v1204, %v1205
    %v1207 = vrot.slane %v1206, 1
    %v1208 = vadd.f32 %v1206, %v1207
    %v1209 = vrcp.pop 16.0
    %v1210 = vmul.f32 %v1199, %v1209
    %v1211 = vmul.f32 %v1208, %v1209
    %v1212 = vpack.c.bf16 %v1210, %v1210
    %v1213 = vpack.c.bf16 %v1211, %v1211
    %v1214 = vld [vmem:[%s6] sm:$0xf]
    %v1215 = vld [vmem:[%s6 + $0x4] sm:$0xf]
    %v1216 = vld [vmem:[%s6 + $0x8] sm:$0xf]
    %v1217 = vld [vmem:[%s6 + $0xc] sm:$0xf]
    %v1218 = vld [vmem:[%s6 + $0x10] sm:$0xf]
    %v1219 = vld [vmem:[%s6 + $0x14] sm:$0xf]
    %v1220 = vld [vmem:[%s6 + $0x18] sm:$0xf]
    %v1221 = vld [vmem:[%s6 + $0x1c] sm:$0xf]
    %v1222 = vld [vmem:[%s7] sm:$0x1]
    %v1224 = vlaneseq
    %v1225 = vshrl.u32 %v1224, 7
    %v1226 = vsub.s32 0, %v1225
    %v1227 = vrot.slane %v1222, %v1226
    %v1231 = vunpack.c.l.b16 %v1212
    %v1232 = vunpack.c.l.b16 %v1213
    %vm1233 = vcmask 1041409
    %v1234 = vsel %vm1233, %v1232, %v1231
    %v1235 = vpack.c.b16 %v1234, %v1234
    %v1244 = vunpack.c.l.b16 %v1214
    %v1245 = vunpack.c.l.b16 %v1215
    %v1246 = vunpack.c.l.b16 %v1216
    %v1247 = vunpack.c.l.b16 %v1217
    %v1248 = vunpack.c.l.b16 %v1218
    %v1249 = vunpack.c.l.b16 %v1219
    %v1250 = vunpack.c.l.b16 %v1220
    %v1251 = vunpack.c.l.b16 %v1221
    %v1252 = vpack.c.b16 %v1245, %v1244
    %v1253 = vpack.c.b16 %v1247, %v1246
    %v1254 = vpack.c.b16 %v1249, %v1248
    %v1255 = vpack.c.b16 %v1251, %v1250
    %v1261 = vsel %vm1190, %v1235, 0
    %1263 = vmatprep.subr.bf16.mxu0 0
    %1264 = vmatpush1.bf16.msra.mxu0 %v1252
    %1265 = vmatprep.subr.bf16.mxu0 0
    %1266 = vmatpush1.bf16.msra.mxu0 %v1253
    %1267 = vmatprep.subr.bf16.mxu0 0
    %1268 = vmatpush1.bf16.msra.mxu0 %v1254
    %1269 = vmatprep.subr.bf16.mxu0 0
    %1270 = vmatpush1.bf16.msra.mxu0 %v1255
    %1271 = vmatprep.subr.bf16.mxu0 0
    %1272 = vmatpush1.bf16.msra.mxu0 0
    %1273 = vmatprep.subr.bf16.mxu0 0
    %1274 = vmatpush1.bf16.msra.mxu0 0
    %1275 = vmatprep.subr.bf16.mxu0 0
    %1276 = vmatpush1.bf16.msra.mxu0 0
    %1277 = vmatprep.subr.bf16.mxu0 0
    %1278 = vmatpush1.bf16.msra.mxu0 0
    %1279 = vmatprep.subr.bf16.mxu0 0
    %1280 = vmatpush1.bf16.msra.mxu0 0
    %1281 = vmatprep.subr.bf16.mxu0 0
    %1282 = vmatpush1.bf16.msra.mxu0 0
    %1283 = vmatprep.subr.bf16.mxu0 0
    %1284 = vmatpush1.bf16.msra.mxu0 0
    %1285 = vmatprep.subr.bf16.mxu0 0
    %1286 = vmatpush1.bf16.msra.mxu0 0
    %1287 = vmatprep.subr.bf16.mxu0 0
    %1288 = vmatpush1.bf16.msra.mxu0 0
    %1289 = vmatprep.subr.bf16.mxu0 0
    %1290 = vmatpush1.bf16.msra.mxu0 0
    %1291 = vmatprep.subr.bf16.mxu0 0
    %1292 = vmatpush1.bf16.msra.mxu0 0
    %1293 = vmatprep.subr.bf16.mxu0 0
    %1294 = vmatpush1.bf16.msra.mxu0 0
    %1295 = vmatprep.mubr.bf16.mxu0 0
    %1296 = vmatmul.mubr.bf16.gmra.mrb[0].mxu0 %v1261
    %v1297 = vpop.f32.mrb[0].mxu0
    %v1298 = vadd.f32 %v1227, %v1297
    %v1299 = vpop.f32.mrb[0].mxu0
    %v1300 = vpop.f32.mrb[0].mxu0
    %v1301 = vpop.f32.mrb[0].mxu0
    %1302 = vdwg.mxu0
    %v1303 = vpack.c.bf16 %v1298, %v1298
    %v1304 = vld [vmem:[%s8] sm:$0xf]
    %v1305 = vld [vmem:[%s8 + $0x4] sm:$0xf]
    %v1306 = vld [vmem:[%s8 + $0x8] sm:$0xf]
    %v1307 = vld [vmem:[%s8 + $0xc] sm:$0xf]
    %v1308 = vld [vmem:[%s9] sm:$0x1]
    %v1310 = vlaneseq
    %v1311 = vshrl.u32 %v1310, 7
    %v1312 = vsub.s32 0, %v1311
    %v1313 = vrot.slane %v1308, %v1312
    %v1319 = vunpack.c.l.b16 %v1304
    %v1320 = vunpack.c.l.b16 %v1305
    %v1321 = vunpack.c.l.b16 %v1306
    %v1322 = vunpack.c.l.b16 %v1307
    %v1323 = vpack.c.b16 %v1320, %v1319
    %v1324 = vpack.c.b16 %v1322, %v1321
    %vm1327 = vcmask 261120
    %v1329 = vsel %vm1327, %v1303, 0
    %1331 = vmatprep.subr.bf16.mxu0 0
    %1332 = vmatpush1.bf16.msra.mxu0 %v1323
    %1333 = vmatprep.subr.bf16.mxu0 0
    %1334 = vmatpush1.bf16.msra.mxu0 %v1324
    %1335 = vmatprep.subr.bf16.mxu0 0
    %1336 = vmatpush1.bf16.msra.mxu0 0
    %1337 = vmatprep.subr.bf16.mxu0 0
    %1338 = vmatpush1.bf16.msra.mxu0 0
    %1339 = vmatprep.subr.bf16.mxu0 0
    %1340 = vmatpush1.bf16.msra.mxu0 0
    %1341 = vmatprep.subr.bf16.mxu0 0
    %1342 = vmatpush1.bf16.msra.mxu0 0
    %1343 = vmatprep.subr.bf16.mxu0 0
    %1344 = vmatpush1.bf16.msra.mxu0 0
    %1345 = vmatprep.subr.bf16.mxu0 0
    %1346 = vmatpush1.bf16.msra.mxu0 0
    %1347 = vmatprep.subr.bf16.mxu0 0
    %1348 = vmatpush1.bf16.msra.mxu0 0
    %1349 = vmatprep.subr.bf16.mxu0 0
    %1350 = vmatpush1.bf16.msra.mxu0 0
    %1351 = vmatprep.subr.bf16.mxu0 0
    %1352 = vmatpush1.bf16.msra.mxu0 0
    %1353 = vmatprep.subr.bf16.mxu0 0
    %1354 = vmatpush1.bf16.msra.mxu0 0
    %1355 = vmatprep.subr.bf16.mxu0 0
    %1356 = vmatpush1.bf16.msra.mxu0 0
    %1357 = vmatprep.subr.bf16.mxu0 0
    %1358 = vmatpush1.bf16.msra.mxu0 0
    %1359 = vmatprep.subr.bf16.mxu0 0
    %1360 = vmatpush1.bf16.msra.mxu0 0
    %1361 = vmatprep.subr.bf16.mxu0 0
    %1362 = vmatpush1.bf16.msra.mxu0 0
    %1363 = vmatprep.mubr.bf16.mxu0 0
    %1364 = vmatmul.mubr.bf16.gmra.mrb[0].mxu0 %v1329
    %v1365 = vpop.f32.mrb[0].mxu0
    %v1366 = vadd.f32 %v1313, %v1365
    %v1367 = vpop.f32.mrb[0].mxu0
    %v1368 = vpop.f32.mrb[0].mxu0
    %v1369 = vpop.f32.mrb[0].mxu0
    %1370 = vdwg.mxu0
    %vm1371 = vcmask 74752
    %1372 = vst.msk [vmem:[#allocation2] sm:$0x3] %vm1371, %v1366
    // Predicated region
    $region42: #{attn_graph_forward.3} parent=1 // pred_check
      _
    $region43: #{attn_graph_forward.3} parent=1 // pred_check_branch
      %1374 = sbr.rel (0) target = $region45
    $region44: #{attn_graph_forward.3} parent=1 // pred_region
      %s1376 = ssub.s32 32, 32
      %1377 = vsyncadd [#allocation3], %s1376
      %s1379 = sshll.u32 [#allocation2], 4
      %s1380 = int_to_ptr.vmem [resolvable:$true] %s1379
      %1382 = dma.vmem_to_hbm [thread:$0]  %s1380, 32, %s10, [#allocation3]
    $region45: #{attn_graph_forward.3} parent=1 // pred_fallthru
      _
    // Predicated region
    $region46: #{attn_graph_forward.3} parent=1 // pred_check
      _
    $region47: #{attn_graph_forward.3} parent=1 // pred_check_branch
      %1384 = sbr.rel (0) target = $region49
    $region48: #{attn_graph_forward.3} parent=1 // pred_region
      %1385 = dma.done [#allocation3], 32
    $region49: #{attn_graph_forward.3} parent=1 // pred_fallthru
      _
    %1386 = vsyncpa [#allocation3], 1

</llo_original>
